<compile_context>
chip_gen: v5e
topology: v5e:2x2
jax: 0.10.0
libtpu: 0.0.40
codegen_flags: <defaults>
</compile_context>

<pallas_src>
import jax
import jax.numpy as jnp
from jax.experimental import pallas as pl
from jax.experimental.pallas import tpu as pltpu


def _round_up(a, m):
    return ((a + m - 1) // m) * m


# ----------------------------------------------------------------------------
# Parameter fusion (done ONCE at init, not per call)
# ----------------------------------------------------------------------------
def fuse_params(params, dtype=jnp.bfloat16):
    """Pre-transpose + fuse the 8 Linear layers into 3 arrays.

    w_big : (D+H, 4H)  rows [0:D]   = [Wix | Wox | Wux | Wfx]      (x side)
                       rows [D:D+H] = [Wih | Woh | Wuh |  0  ]     (h_sum side)
    w_fh  : (H, H)     per-child forget projection Wfh
    bias  : (1, 4H)    [ix_b+ih_b | ox_b+oh_b | ux_b+uh_b | fx_b+fh_b]  (f32)
    """
    wx = jnp.concatenate([params["ix_w"].T, params["ox_w"].T,
                          params["ux_w"].T, params["fx_w"].T], axis=1)
    wh = jnp.concatenate([params["ih_w"].T, params["oh_w"].T,
                          params["uh_w"].T, jnp.zeros_like(params["fh_w"].T)],
                         axis=1)
    w_big = jnp.concatenate([wx, wh], axis=0).astype(dtype)         # (D+H, 4H)
    w_fh = params["fh_w"].T.astype(dtype)                           # (H, H)
    bias = jnp.concatenate([params["ix_b"] + params["ih_b"],
                            params["ox_b"] + params["oh_b"],
                            params["ux_b"] + params["uh_b"],
                            params["fx_b"] + params["fh_b"]],
                           axis=0)[None, :].astype(jnp.float32)     # (1, 4H)
    return {"w_big": w_big, "w_fh": w_fh, "bias": bias,
            "input_size": wx.shape[0], "hidden_size": w_fh.shape[0]}


# ----------------------------------------------------------------------------
# Kernel: one grid step = TB tree nodes of the same level
# ----------------------------------------------------------------------------
def _level_kernel(x_ref, ch_ref, cc_ref, wbig_ref, wfh_ref, b_ref, c_ref, h_ref):
    """x_ref    : (TB, D)       node input features (caller dtype)
       ch_ref   : (TB, N, H)    children hidden states, zero-padded on N
       cc_ref   : (TB, N, H)    children cell states (f32), zero-padded on N
       wbig_ref : (D+H, 4H)     [[Wix|Wox|Wux|Wfx]; [Wih|Woh|Wuh|0]]  (bf16)
       wfh_ref  : (H, H)        Wfh                                   (bf16)
       b_ref    : (1, 4H)       fused biases (f32)
       c_ref    : (TB, H) f32   cell state out
       h_ref    : (TB, H) bf16  hidden state out (next level's MXU operand)
    """
    TB, N, H = cc_ref.shape
    cdt = wbig_ref.dtype

    ch = ch_ref[...]                                       # (TB, N, H)
    # Per-node sum of children hidden states (XLU sublane reduce, f32 acc).
    h_sum = jnp.sum(ch, axis=1, dtype=jnp.float32)         # (TB, H)

    # Per-child forget projection: one (TB*N, H) @ (H, H) MXU pass.
    ch2 = ch.astype(cdt).reshape(TB * N, H)                # free reshape: N % 16 == 0
    fh = jnp.dot(ch2, wfh_ref[...],
                 preferred_element_type=jnp.float32)       # (TB*N, H)

    # Fused gate projection with K = D + H: [x | h_sum] @ W_big.
    xh = jnp.concatenate([x_ref[...].astype(cdt), h_sum.astype(cdt)], axis=1)
    g = jnp.dot(xh, wbig_ref[...],
                preferred_element_type=jnp.float32) + b_ref[...]   # (TB, 4H)

    i = jax.nn.sigmoid(g[:, :H])
    o = jax.nn.sigmoid(g[:, H:2 * H])
    u = jnp.tanh(g[:, 2 * H:3 * H])
    # TODO(synk): nn.Dropout(u) is the identity in eval mode; train-mode
    # stochastic dropout (PRNG mask) is intentionally not implemented here.

    # Per-child forget gates: sigmoid(Wfh h_j + Wfx x + fx_b + fh_b).
    fxb = g[:, 3 * H:]                                     # fx(x)+fx_b+fh_b (fh block of W_big is 0)
    f = jax.nn.sigmoid(fh.reshape(TB, N, H) + fxb[:, None, :])      # (TB, N, H)
    fc_sum = jnp.sum(f * cc_ref[...].astype(jnp.float32), axis=1)   # (TB, H)

    c = i * u + fc_sum
    c_ref[...] = c.astype(c_ref.dtype)
    h_ref[...] = (o * jnp.tanh(c)).astype(h_ref.dtype)


# ----------------------------------------------------------------------------
# Wrappers
# ----------------------------------------------------------------------------
def child_sum_tree_lstm_level(inputs, child_c, child_h, fused, *, tb_max=128):
    """Run the cell for B same-level nodes in one pallas_call.

    inputs  : (B, D)
    child_c : (B, N_max, H)  zero-padded past each node's real child count (f32)
    child_h : (B, N_max, H)  zero-padded likewise (f32 or bf16)
    Returns (c, h): c (B, H) f32, h (B, H) bf16.
    """
    B, D = inputs.shape
    Bc, N, H = child_c.shape
    assert child_h.shape == (Bc, N, H) and Bc == B
    assert D == fused["input_size"] and H == fused["hidden_size"]

    # Child axis: zero-pad to a multiple of 16 so the in-kernel reshapes are
    # layout-preserving for bf16 (and f32).  Zero children are exact (they add
    # 0 to both h_sum and f*c).  Upstream level producers should emit
    # 16-aligned buffers so this pad is usually a no-op.
    N_pad = _round_up(N, 16)
    if N_pad != N:
        pad = ((0, 0), (0, N_pad - N), (0, 0))
        child_c = jnp.pad(child_c, pad)
        child_h = jnp.pad(child_h, pad)

    # Node-tile size: large enough to fill the MXU M dim and amortize the
    # per-grid-step overhead, but capped near B/2 so medium levels still give
    # >= 2 grid steps (keeps both v7x TensorCores busy under "parallel").
    tb = max(8, min(tb_max, _round_up((B + 1) // 2, 8)))
    num_tiles = pl.cdiv(B, tb)
    # The node axis is NOT padded: the last (partial) tile's out-of-bounds
    # rows are unspecified on read and masked on write; each node row's result
    # depends only on its own row, so valid rows are unaffected.

    H4 = 4 * H
    itemsz = lambda a: a.size * a.dtype.itemsize
    cost = pl.CostEstimate(
        flops=int(2 * B * ((D + H) * H4 + N_pad * H * H)
                  + 12 * B * H + 3 * B * N_pad * H),
        transcendentals=int(B * (4 * H + N_pad * H)),
        bytes_accessed=int(itemsz(inputs) + itemsz(child_h) + itemsz(child_c)
                           + itemsz(fused["w_big"]) + itemsz(fused["w_fh"])
                           + itemsz(fused["bias"]) + B * H * 4 + B * H * 2),
    )

    c, h = pl.pallas_call(
        _level_kernel,
        out_shape=(jax.ShapeDtypeStruct((B, H), jnp.float32),     # c
                   jax.ShapeDtypeStruct((B, H), jnp.bfloat16)),   # h
        grid=(num_tiles,),
        in_specs=[
            pl.BlockSpec((tb, D), lambda b: (b, 0)),              # x
            pl.BlockSpec((tb, N_pad, H), lambda b: (b, 0, 0)),    # child_h
            pl.BlockSpec((tb, N_pad, H), lambda b: (b, 0, 0)),    # child_c (f32)
            pl.BlockSpec((D + H, H4), lambda b: (0, 0)),          # W_big (VMEM-resident)
            pl.BlockSpec((H, H), lambda b: (0, 0)),               # W_fh  (VMEM-resident)
            pl.BlockSpec((1, H4), lambda b: (0, 0)),              # fused biases
        ],
        out_specs=(pl.BlockSpec((tb, H), lambda b: (b, 0)),
                   pl.BlockSpec((tb, H), lambda b: (b, 0))),
        compiler_params=pltpu.CompilerParams(
            dimension_semantics=("parallel",),   # shard node tiles across v7x's 2 TCs
            vmem_limit_bytes=32 * 1024 * 1024,   # headroom for tb up to 256 on v5e
        ),
        cost_estimate=cost,
    )(inputs, child_h, child_c, fused["w_big"], fused["w_fh"], fused["bias"])
    return c, h


def batch_child_sum_tree_lstm_cell(inputs, child_c, child_h, fused):
    """Drop-in equivalent of the torch module's forward (eval mode):
    inputs (1, D), child_c/child_h (N, 1, H)  ->  (c, h) each (1, H)
    (c is f32, h is bf16 — h feeds the next level's MXU as bf16)."""
    N, _, H = child_c.shape
    return child_sum_tree_lstm_level(
        inputs, child_c.reshape(1, N, H), child_h.reshape(1, N, H), fused)


# ----------------------------------------------------------------------------
# Pure-JAX reference (mirrors the torch forward, batched over nodes; MXU
# operands cast the same way the kernel does so the comparison is fair)
# ----------------------------------------------------------------------------
def _reference(inputs, child_c, child_h, params, compute_dtype=jnp.float32):
    cdt = compute_dtype

    def lin(xx, w, b):
        return jnp.dot(xx.astype(cdt), w.T.astype(cdt),
                       preferred_element_type=jnp.float32) + b

    B, N, H = child_h.shape
    h_sum = jnp.sum(child_h.astype(jnp.float32), axis=1)              # (B, H)
    i = jax.nn.sigmoid(lin(inputs, params["ix_w"], params["ix_b"]) +
                       lin(h_sum, params["ih_w"], params["ih_b"]))
    o = jax.nn.sigmoid(lin(inputs, params["ox_w"], params["ox_b"]) +
                       lin(h_sum, params["oh_w"], params["oh_b"]))
    u = jnp.tanh(lin(inputs, params["ux_w"], params["ux_b"]) +
                 lin(h_sum, params["uh_w"], params["uh_b"]))
    fx = lin(inputs, params["fx_w"], params["fx_b"])                  # (B, H)
    fh = lin(child_h.reshape(B * N, H),
             params["fh_w"], params["fh_b"]).reshape(B, N, H)
    f = jax.nn.sigmoid(fh + fx[:, None, :])
    c = i * u + jnp.sum(f * child_c.astype(jnp.float32), axis=1)
    h = o * jnp.tanh(c)
    return c, h


def _init_params(key, input_size, hidden_size):
    names_in = {"ix": input_size, "fx": input_size, "ux": input_size, "ox": input_size,
                "ih": hidden_size, "fh": hidden_size, "uh": hidden_size, "oh": hidden_size}
    params = {}
    keys = jax.random.split(key, 2 * len(names_in))
    for idx, (name, fan_in) in enumerate(sorted(names_in.items())):
        bound = 1.0 / jnp.sqrt(fan_in)
        params[name + "_w"] = jax.random.uniform(
            keys[2 * idx], (hidden_size, fan_in), jnp.float32, -bound, bound)
        params[name + "_b"] = jax.random.uniform(
            keys[2 * idx + 1], (hidden_size,), jnp.float32, -bound, bound)
    return params


if __name__ == "__main__":
    INPUT_SIZE = 128
    HIDDEN_SIZE = 128
    TOL = dict(atol=2e-2, rtol=2e-2)     # bf16 MXU operands -> loosened tolerance

    key = jax.random.PRNGKey(0)
    (k_params, k_x1, k_c1, k_h1, k_x2, k_c2, k_h2,
     k_x3, k_c3, k_h3, k_cnt) = jax.random.split(key, 11)

    params = _init_params(k_params, INPUT_SIZE, HIDDEN_SIZE)
    fused = fuse_params(params)          # fusion done once; reused for every call

    # --- 1) single-node call (exactly the torch module's forward signature) --
    N_CHILDREN = 8
    inputs1 = jax.random.normal(k_x1, (1, INPUT_SIZE), jnp.float32)
    child_c1 = jax.random.normal(k_c1, (N_CHILDREN, 1, HIDDEN_SIZE), jnp.float32)
    child_h1 = jax.random.normal(k_h1, (N_CHILDREN, 1, HIDDEN_SIZE), jnp.float32)

    c1, h1 = batch_child_sum_tree_lstm_cell(inputs1, child_c1, child_h1, fused)
    jax.block_until_ready((c1, h1))
    c1_ref, h1_ref = _reference(
        inputs1, child_c1.reshape(1, N_CHILDREN, HIDDEN_SIZE),
        child_h1.reshape(1, N_CHILDREN, HIDDEN_SIZE), params,
        compute_dtype=jnp.bfloat16)
    assert jnp.allclose(c1, c1_ref, **TOL), "single-node c mismatch"
    assert jnp.allclose(h1.astype(jnp.float32), h1_ref, **TOL), "single-node h mismatch"

    # --- 2) small level with ragged child counts (single partial tile) -------
    counts_small = jnp.asarray([3, 1, 4, 2, 6])
    B2, N2 = 5, 6
    inputs2 = jax.random.normal(k_x2, (B2, INPUT_SIZE), jnp.float32)
    cc_small = jax.random.normal(k_c2, (B2, N2, HIDDEN_SIZE), jnp.float32)
    ch_small = jax.random.normal(k_h2, (B2, N2, HIDDEN_SIZE), jnp.float32)
    mask2 = (jnp.arange(N2)[None, :] < counts_small[:, None])[..., None]
    cc_small = cc_small * mask2
    ch_small = ch_small * mask2

    c2, h2 = child_sum_tree_lstm_level(inputs2, cc_small, ch_small, fused)
    jax.block_until_ready((c2, h2))
    c2_ref, h2_ref = _reference(inputs2, cc_small, ch_small, params,
                                compute_dtype=jnp.bfloat16)
    assert jnp.allclose(c2, c2_ref, **TOL), "small-level c mismatch"
    assert jnp.allclose(h2.astype(jnp.float32), h2_ref, **TOL), "small-level h mismatch"

    # --- 3) larger level: multi-tile grid + partial last tile ----------------
    B3, N3 = 300, 5
    inputs3 = jax.random.normal(k_x3, (B3, INPUT_SIZE), jnp.float32)
    cc_big = jax.random.normal(k_c3, (B3, N3, HIDDEN_SIZE), jnp.float32)
    ch_big = jax.random.normal(k_h3, (B3, N3, HIDDEN_SIZE), jnp.float32)
    counts_big = jax.random.randint(k_cnt, (B3,), 1, N3 + 1)
    mask3 = (jnp.arange(N3)[None, :] < counts_big[:, None])[..., None]
    cc_big = cc_big * mask3
    ch_big = ch_big * mask3

    c3, h3 = child_sum_tree_lstm_level(inputs3, cc_big, ch_big, fused)
    jax.block_until_ready((c3, h3))
    c3_ref, h3_ref = _reference(inputs3, cc_big, ch_big, params,
                                compute_dtype=jnp.bfloat16)
    assert jnp.allclose(c3, c3_ref, **TOL), "large-level c mismatch"
    assert jnp.allclose(h3.astype(jnp.float32), h3_ref, **TOL), "large-level h mismatch"

    print("KERNEL_OK")
</pallas_src>

<mosaic_0001>
module attributes {stable_mosaic.version = 11 : i64} {
  func.func @_level_kernel(%arg0: i32, %arg1: memref<8x128xf32, #tpu.memory_space<vmem>>, %arg2: memref<8x16x128xf32, #tpu.memory_space<vmem>>, %arg3: memref<8x16x128xf32, #tpu.memory_space<vmem>>, %arg4: memref<256x512xbf16, #tpu.memory_space<vmem>>, %arg5: memref<128x128xbf16, #tpu.memory_space<vmem>>, %arg6: memref<1x512xf32, #tpu.memory_space<vmem>>, %arg7: memref<8x128xf32, #tpu.memory_space<vmem>>, %arg8: memref<8x128xbf16, #tpu.memory_space<vmem>>) attributes {dimension_semantics = [#tpu.dimension_semantics<parallel>], iteration_bounds = array<i64: 1>, scalar_prefetch = 0 : i64, scratch_operands = 0 : i64, tpu.core_type = #tpu.core_type<tc>, window_params = [{transform_indices = @transform_0, window_bounds = array<i64: 8, 128>}, {transform_indices = @transform_1, window_bounds = array<i64: 8, 16, 128>}, {transform_indices = @transform_2, window_bounds = array<i64: 8, 16, 128>}, {pipeline_mode = #tpu.pipeline_mode<synchronous>, transform_indices = @transform_3, window_bounds = array<i64: 256, 512>}, {pipeline_mode = #tpu.pipeline_mode<synchronous>, transform_indices = @transform_4, window_bounds = array<i64: 128, 128>}, {pipeline_mode = #tpu.pipeline_mode<synchronous>, transform_indices = @transform_5, window_bounds = array<i64: 1, 512>}, {transform_indices = @transform_6, window_bounds = array<i64: 8, 128>}, {transform_indices = @transform_7, window_bounds = array<i64: 8, 128>}]} {
    %c0 = arith.constant 0 : index
    %c0_0 = arith.constant 0 : index
    %c0_1 = arith.constant 0 : index
    %0 = vector.load %arg2[%c0, %c0_0, %c0_1] : memref<8x16x128xf32, #tpu.memory_space<vmem>>, vector<8x16x128xf32>
    %cst = arith.constant dense<0.000000e+00> : vector<8x128xf32>
    %1 = vector.multi_reduction <add>, %0, %cst [1] : vector<8x16x128xf32> to vector<8x128xf32>
    %2 = arith.truncf %0 : vector<8x16x128xf32> to vector<8x16x128xbf16>
    %3 = vector.shape_cast %2 : vector<8x16x128xbf16> to vector<128x128xbf16>
    %c0_2 = arith.constant 0 : index
    %c0_3 = arith.constant 0 : index
    %4 = vector.load %arg5[%c0_2, %c0_3] : memref<128x128xbf16, #tpu.memory_space<vmem>>, vector<128x128xbf16>
    %cst_4 = arith.constant dense<0.000000e+00> : vector<128x128xf32>
    %5 = tpu.matmul %3, %4, %cst_4 {dimension_numbers = #tpu.dot_dimension_numbers<[1], [0], [0], [1], [0, 0, 1, 1], [], []>} : vector<128x128xbf16>, vector<128x128xbf16>, vector<128x128xf32> -> vector<128x128xf32>
    %c0_5 = arith.constant 0 : index
    %c0_6 = arith.constant 0 : index
    %6 = vector.load %arg1[%c0_5, %c0_6] : memref<8x128xf32, #tpu.memory_space<vmem>>, vector<8x128xf32>
    %7 = arith.truncf %6 : vector<8x128xf32> to vector<8x128xbf16>
    %8 = arith.truncf %1 : vector<8x128xf32> to vector<8x128xbf16>
    %9 = tpu.concatenate %7, %8 in 1 : vector<8x128xbf16>, vector<8x128xbf16> -> vector<8x256xbf16>
    %c0_7 = arith.constant 0 : index
    %c0_8 = arith.constant 0 : index
    %10 = vector.load %arg4[%c0_7, %c0_8] : memref<256x512xbf16, #tpu.memory_space<vmem>>, vector<256x512xbf16>
    %cst_9 = arith.constant dense<0.000000e+00> : vector<8x512xf32>
    %11 = tpu.matmul %9, %10, %cst_9 {dimension_numbers = #tpu.dot_dimension_numbers<[1], [0], [0], [1], [0, 0, 1, 1], [], []>} : vector<8x256xbf16>, vector<256x512xbf16>, vector<8x512xf32> -> vector<8x512xf32>
    %c0_10 = arith.constant 0 : index
    %c0_11 = arith.constant 0 : index
    %12 = vector.load %arg6[%c0_10, %c0_11] : memref<1x512xf32, #tpu.memory_space<vmem>>, vector<1x512xf32>
    %13 = vector.broadcast %12 : vector<1x512xf32> to vector<8x512xf32>
    %14 = arith.addf %11, %13 : vector<8x512xf32>
    %15 = vector.extract_strided_slice %14 {offsets = [0, 0], sizes = [8, 128], strides = [1, 1]} : vector<8x512xf32> to vector<8x128xf32>
    %16 = arith.negf %15 : vector<8x128xf32>
    %17 = math.exp %16 : vector<8x128xf32>
    %cst_12 = arith.constant 1.000000e+00 : f32
    %18 = vector.broadcast %cst_12 : f32 to vector<8x128xf32>
    %19 = arith.addf %18, %17 : vector<8x128xf32>
    %20 = arith.divf %18, %19 : vector<8x128xf32>
    %21 = vector.extract_strided_slice %14 {offsets = [0, 128], sizes = [8, 128], strides = [1, 1]} : vector<8x512xf32> to vector<8x128xf32>
    %22 = arith.negf %21 : vector<8x128xf32>
    %23 = math.exp %22 : vector<8x128xf32>
    %cst_13 = arith.constant 1.000000e+00 : f32
    %24 = vector.broadcast %cst_13 : f32 to vector<8x128xf32>
    %25 = arith.addf %24, %23 : vector<8x128xf32>
    %26 = arith.divf %24, %25 : vector<8x128xf32>
    %27 = vector.extract_strided_slice %14 {offsets = [0, 256], sizes = [8, 128], strides = [1, 1]} : vector<8x512xf32> to vector<8x128xf32>
    %28 = math.tanh %27 : vector<8x128xf32>
    %29 = vector.extract_strided_slice %14 {offsets = [0, 384], sizes = [8, 128], strides = [1, 1]} : vector<8x512xf32> to vector<8x128xf32>
    %30 = vector.shape_cast %5 : vector<128x128xf32> to vector<8x16x128xf32>
    %31 = vector.shape_cast %29 : vector<8x128xf32> to vector<8x1x128xf32>
    %32 = vector.broadcast %31 : vector<8x1x128xf32> to vector<8x16x128xf32>
    %33 = arith.addf %30, %32 : vector<8x16x128xf32>
    %34 = arith.negf %33 : vector<8x16x128xf32>
    %35 = math.exp %34 : vector<8x16x128xf32>
    %cst_14 = arith.constant 1.000000e+00 : f32
    %36 = vector.broadcast %cst_14 : f32 to vector<8x16x128xf32>
    %37 = arith.addf %36, %35 : vector<8x16x128xf32>
    %38 = arith.divf %36, %37 : vector<8x16x128xf32>
    %c0_15 = arith.constant 0 : index
    %c0_16 = arith.constant 0 : index
    %c0_17 = arith.constant 0 : index
    %39 = vector.load %arg3[%c0_15, %c0_16, %c0_17] : memref<8x16x128xf32, #tpu.memory_space<vmem>>, vector<8x16x128xf32>
    %40 = arith.mulf %38, %39 : vector<8x16x128xf32>
    %cst_18 = arith.constant dense<0.000000e+00> : vector<8x128xf32>
    %41 = vector.multi_reduction <add>, %40, %cst_18 [1] : vector<8x16x128xf32> to vector<8x128xf32>
    %42 = arith.mulf %20, %28 : vector<8x128xf32>
    %43 = arith.addf %42, %41 : vector<8x128xf32>
    %c0_19 = arith.constant 0 : index
    %c0_20 = arith.constant 0 : index
    %44 = vector.load %arg7[%c0_19, %c0_20] : memref<8x128xf32, #tpu.memory_space<vmem>>, vector<8x128xf32>
    tpu.vector_store %arg7[%c0_19, %c0_20], %43 {strides = array<i32>} : memref<8x128xf32, #tpu.memory_space<vmem>>, vector<8x128xf32>,
    %45 = math.tanh %43 : vector<8x128xf32>
    %46 = arith.mulf %26, %45 : vector<8x128xf32>
    %47 = arith.truncf %46 : vector<8x128xf32> to vector<8x128xbf16>
    %c0_21 = arith.constant 0 : index
    %c0_22 = arith.constant 0 : index
    %48 = vector.load %arg8[%c0_21, %c0_22] : memref<8x128xbf16, #tpu.memory_space<vmem>>, vector<8x128xbf16>
    tpu.vector_store %arg8[%c0_21, %c0_22], %47 {strides = array<i32>} : memref<8x128xbf16, #tpu.memory_space<vmem>>, vector<8x128xbf16>,
    return
  }
  func.func @transform_0(%arg0: i32) -> (i32, i32) {
    %c0_i32 = arith.constant 0 : i32
    %c0_i32_0 = arith.constant 0 : i32
    return %arg0, %c0_i32 : i32, i32
  }
  func.func @transform_1(%arg0: i32) -> (i32, i32, i32) {
    %c0_i32 = arith.constant 0 : i32
    %c0_i32_0 = arith.constant 0 : i32
    %c0_i32_1 = arith.constant 0 : i32
    return %arg0, %c0_i32, %c0_i32_0 : i32, i32, i32
  }
  func.func @transform_2(%arg0: i32) -> (i32, i32, i32) {
    %c0_i32 = arith.constant 0 : i32
    %c0_i32_0 = arith.constant 0 : i32
    %c0_i32_1 = arith.constant 0 : i32
    return %arg0, %c0_i32, %c0_i32_0 : i32, i32, i32
  }
  func.func @transform_3(%arg0: i32) -> (i32, i32) {
    %c0_i32 = arith.constant 0 : i32
    %c0_i32_0 = arith.constant 0 : i32
    %c0_i32_1 = arith.constant 0 : i32
    return %c0_i32, %c0_i32_0 : i32, i32
  }
  func.func @transform_4(%arg0: i32) -> (i32, i32) {
    %c0_i32 = arith.constant 0 : i32
    %c0_i32_0 = arith.constant 0 : i32
    %c0_i32_1 = arith.constant 0 : i32
    return %c0_i32, %c0_i32_0 : i32, i32
  }
  func.func @transform_5(%arg0: i32) -> (i32, i32) {
    %c0_i32 = arith.constant 0 : i32
    %c0_i32_0 = arith.constant 0 : i32
    %c0_i32_1 = arith.constant 0 : i32
    return %c0_i32, %c0_i32_0 : i32, i32
  }
  func.func @transform_6(%arg0: i32) -> (i32, i32) {
    %c0_i32 = arith.constant 0 : i32
    %c0_i32_0 = arith.constant 0 : i32
    return %arg0, %c0_i32 : i32, i32
  }
  func.func @transform_7(%arg0: i32) -> (i32, i32) {
    %c0_i32 = arith.constant 0 : i32
    %c0_i32_0 = arith.constant 0 : i32
    return %arg0, %c0_i32 : i32, i32
  }
}

</mosaic_0001>

<llo_original>
// kernel: tpu_custom_call.1
$region0: #{tpu_custom_call.1}
  #allocation0 [shape = 'u32[]', space=smem, size = 0x4, offset = 0x4, fixed_abs, tag = 'smem constant byte address 0x4 - core index']
  #allocation1 [shape = 'u32[72,128]{1,0:T(1,128)}', space=vmem, size = 0x9000, scoped, tag = 'internal scratch']
  %s0 = inlined_call_operand.hbm [shape: f32[1,128], index: 0, kind: input, shape index: {}]
  %s1 = inlined_call_operand.hbm [shape: f32[1,16,128], index: 1, kind: input, shape index: {}]
  %s2 = inlined_call_operand.hbm [shape: f32[1,16,128], index: 2, kind: input, shape index: {}]
  %s3 = inlined_call_operand.hbm [shape: bf16[256,512], index: 3, kind: input, shape index: {}]
  %s4 = inlined_call_operand.hbm [shape: bf16[128,128], index: 4, kind: input, shape index: {}]
  %s5 = inlined_call_operand.vmem [shape: f32[1,512], index: 5, kind: input, shape index: {}]
  %s6 = inlined_call_operand.hbm [shape: f32[1,128], index: 6, kind: output, shape index: {0}]
  %s7 = inlined_call_operand.hbm [shape: bf16[1,128], index: 7, kind: output, shape index: {1}]
  %8 = xla_tuple %s6, %s7
  %s9 = sld [smem:[#allocation0]]
  $region62: #{tpu_custom_call.1} parent=0
    _
  %s11 = ssub.s32 1, %s9
  %s12 = scalar_select 0, %s11, %s9
  $region1: #{tpu_custom_call.1} parent=0
    #allocation2 [shape = 'u8[4096]{0}', space=vmem, size = 0x1000, scoped, tag = 'input window, operand 0, single buffered']
    #allocation3 [shape = 's32[1]{0}', space=sflag, size = 0x4, scoped, tag = 'scoped memory for tpu_custom_call.1']
    #allocation4 [shape = 's32[1]{0}', space=sflag, size = 0x4, scoped, tag = 'scoped memory for tpu_custom_call.1']
    #allocation5 [shape = 'u8[65536]{0}', space=vmem, size = 0x10000, scoped, tag = 'input window, operand 1, single buffered']
    #allocation6 [shape = 's32[1]{0}', space=sflag, size = 0x4, scoped, tag = 'scoped memory for tpu_custom_call.1']
    #allocation7 [shape = 'u8[65536]{0}', space=vmem, size = 0x10000, scoped, tag = 'input window, operand 2, single buffered']
    #allocation8 [shape = 'u8[262144]{0}', space=vmem, size = 0x40000, scoped, tag = 'input window, operand 3, single buffered']
    #allocation9 [shape = 's32[1]{0}', space=sflag, size = 0x4, scoped, tag = 'scoped memory for tpu_custom_call.1']
    #allocation10 [shape = 'u8[32768]{0}', space=vmem, size = 0x8000, scoped, tag = 'input window, operand 4, single buffered']
    #allocation11 [shape = 'u8[4096]{0}', space=vmem, size = 0x1000, scoped, tag = 'output window, operand 0, single buffered']
    #allocation12 [shape = 'u8[2048]{0}', space=vmem, size = 0x800, scoped, tag = 'output window, operand 1, single buffered']
    #allocation13 [shape = 's32[1]{0}', space=sflag, size = 0x4, scoped, tag = 'scoped memory for tpu_custom_call.1']
    %13 = vsyncpa [#allocation3], 0
    %14 = vsyncpa [#allocation6], 0
    %15 = vsyncpa [#allocation9], 0
    %16 = vsyncpa [#allocation4], 0
    %17 = vsyncpa [#allocation13], 0
    // Predicated region
    $region2: #{tpu_custom_call.1} parent=1 // pred_check
      _
    $region3: #{tpu_custom_call.1} parent=1 // pred_check_branch
      %19 = sbr.rel (0) target = $region5
    $region4: #{tpu_custom_call.1} parent=1 // pred_region
      %21 = vsyncadd [#allocation3], 112
      %s22 = sshll.u32 %s0, 4
      %s23 = int_to_ptr.hbm [resolvable:$true] %s22
      %s24 = sshll.u32 [#allocation2], 4
      %s25 = int_to_ptr.vmem [resolvable:$true] %s24
      %30 = dma.hbm_to_vmem [thread:$0]  %s23, 16, %s25, [#allocation3], 16, 16, 1
    $region5: #{tpu_custom_call.1} parent=1 // pred_fallthru
      _
    // Predicated region
    $region6: #{tpu_custom_call.1} parent=1 // pred_check
      _
    $region7: #{tpu_custom_call.1} parent=1 // pred_check_branch
      %32 = sbr.rel (0) target = $region9
    $region8: #{tpu_custom_call.1} parent=1 // pred_region
      %34 = vsyncadd [#allocation6], 1792
      %s35 = sshll.u32 %s1, 4
      %s36 = int_to_ptr.hbm [resolvable:$true] %s35
      %s37 = sshll.u32 [#allocation5], 4
      %s38 = int_to_ptr.vmem [resolvable:$true] %s37
      %43 = dma.hbm_to_vmem [thread:$0]  %s36, 256, %s38, [#allocation6], 128, 128, 8
    $region9: #{tpu_custom_call.1} parent=1 // pred_fallthru
      _
    // Predicated region
    $region10: #{tpu_custom_call.1} parent=1 // pred_check
      _
    $region11: #{tpu_custom_call.1} parent=1 // pred_check_branch
      %45 = sbr.rel (0) target = $region13
    $region12: #{tpu_custom_call.1} parent=1 // pred_region
      %47 = vsyncadd [#allocation6], 1792
      %s48 = sshll.u32 %s2, 4
      %s49 = int_to_ptr.hbm [resolvable:$true] %s48
      %s50 = sshll.u32 [#allocation7], 4
      %s51 = int_to_ptr.vmem [resolvable:$true] %s50
      %56 = dma.hbm_to_vmem [thread:$0]  %s49, 256, %s51, [#allocation6], 128, 128, 8
    $region13: #{tpu_custom_call.1} parent=1 // pred_fallthru
      _
    // Predicated region
    $region14: #{tpu_custom_call.1} parent=1 // pred_check
      _
    $region15: #{tpu_custom_call.1} parent=1 // pred_check_branch
      %58 = sbr.rel (0) target = $region17
    $region16: #{tpu_custom_call.1} parent=1 // pred_region
      %60 = vsyncadd [#allocation9], 0
      %s61 = sshll.u32 %s3, 4
      %s62 = int_to_ptr.hbm [resolvable:$true] %s61
      %s63 = sshll.u32 [#allocation8], 4
      %s64 = int_to_ptr.vmem [resolvable:$true] %s63
      %69 = dma.hbm_to_vmem [thread:$0]  %s62, 8192, %s64, [#allocation9], 256, 256, 16
    $region17: #{tpu_custom_call.1} parent=1 // pred_fallthru
      _
    // Predicated region
    $region18: #{tpu_custom_call.1} parent=1 // pred_check
      _
    $region19: #{tpu_custom_call.1} parent=1 // pred_check_branch
      %71 = sbr.rel (0) target = $region21
    $region20: #{tpu_custom_call.1} parent=1 // pred_region
      %73 = vsyncadd [#allocation9], 0
      %s74 = sshll.u32 %s4, 4
      %s75 = int_to_ptr.hbm [resolvable:$true] %s74
      %s76 = sshll.u32 [#allocation10], 4
      %s77 = int_to_ptr.vmem [resolvable:$true] %s76
      %82 = dma.hbm_to_vmem [thread:$0]  %s75, 1024, %s77, [#allocation9], 64, 64, 4
    $region21: #{tpu_custom_call.1} parent=1 // pred_fallthru
      _
    // Predicated region
    $region22: #{tpu_custom_call.1} parent=1 // pred_check
      _
    $region23: #{tpu_custom_call.1} parent=1 // pred_check_branch
      %84 = sbr.rel (0) target = $region25
    $region24: #{tpu_custom_call.1} parent=1 // pred_region
      _
    $region25: #{tpu_custom_call.1} parent=1 // pred_fallthru
      _
    // Predicated region
    $region26: #{tpu_custom_call.1} parent=1 // pred_check
      _
    $region27: #{tpu_custom_call.1} parent=1 // pred_check_branch
      %86 = sbr.rel (0) target = $region29
    $region28: #{tpu_custom_call.1} parent=1 // pred_region
      %88 = dma.done [#allocation3], 128
    $region29: #{tpu_custom_call.1} parent=1 // pred_fallthru
      _
    // Predicated region
    $region30: #{tpu_custom_call.1} parent=1 // pred_check
      _
    $region31: #{tpu_custom_call.1} parent=1 // pred_check_branch
      %90 = sbr.rel (0) target = $region33
    $region32: #{tpu_custom_call.1} parent=1 // pred_region
      %92 = dma.done [#allocation6], 2048
    $region33: #{tpu_custom_call.1} parent=1 // pred_fallthru
      _
    // Predicated region
    $region34: #{tpu_custom_call.1} parent=1 // pred_check
      _
    $region35: #{tpu_custom_call.1} parent=1 // pred_check_branch
      %94 = sbr.rel (0) target = $region37
    $region36: #{tpu_custom_call.1} parent=1 // pred_region
      %96 = dma.done [#allocation6], 2048
    $region37: #{tpu_custom_call.1} parent=1 // pred_fallthru
      _
    // Predicated region
    $region38: #{tpu_custom_call.1} parent=1 // pred_check
      _
    $region39: #{tpu_custom_call.1} parent=1 // pred_check_branch
      %98 = sbr.rel (0) target = $region41
    $region40: #{tpu_custom_call.1} parent=1 // pred_region
      %100 = dma.done [#allocation9], 8192
    $region41: #{tpu_custom_call.1} parent=1 // pred_fallthru
      _
    // Predicated region
    $region42: #{tpu_custom_call.1} parent=1 // pred_check
      _
    $region43: #{tpu_custom_call.1} parent=1 // pred_check_branch
      %102 = sbr.rel (0) target = $region45
    $region44: #{tpu_custom_call.1} parent=1 // pred_region
      %104 = dma.done [#allocation9], 1024
    $region45: #{tpu_custom_call.1} parent=1 // pred_fallthru
      _
    %v105 = vld [vmem:[#allocation5] sm:$0xff]
    %v106 = vld [vmem:[#allocation5 + $0x8] sm:$0xff]
    %v107 = vld [vmem:[#allocation5 + $0x10] sm:$0xff]
    %v108 = vld [vmem:[#allocation5 + $0x18] sm:$0xff]
    %v109 = vld [vmem:[#allocation5 + $0x20] sm:$0xff]
    %v110 = vld [vmem:[#allocation5 + $0x28] sm:$0xff]
    %v111 = vld [vmem:[#allocation5 + $0x30] sm:$0xff]
    %v112 = vld [vmem:[#allocation5 + $0x38] sm:$0xff]
    %v113 = vld [vmem:[#allocation5 + $0x40] sm:$0xff]
    %v114 = vld [vmem:[#allocation5 + $0x48] sm:$0xff]
    %v115 = vld [vmem:[#allocation5 + $0x50] sm:$0xff]
    %v116 = vld [vmem:[#allocation5 + $0x58] sm:$0xff]
    %v117 = vld [vmem:[#allocation5 + $0x60] sm:$0xff]
    %v118 = vld [vmem:[#allocation5 + $0x68] sm:$0xff]
    %v119 = vld [vmem:[#allocation5 + $0x70] sm:$0xff]
    %v120 = vld [vmem:[#allocation5 + $0x78] sm:$0xff]
    %v121 = vadd.f32 %v105, %v106
    %v122 = vrot.slane %v121, 4
    %v123 = vadd.f32 %v121, %v122
    %v124 = vrot.slane %v123, 2
    %v125 = vadd.f32 %v123, %v124
    %v126 = vrot.slane %v125, 1
    %v127 = vadd.f32 %v125, %v126
    %v128 = vadd.f32 %v107, %v108
    %v129 = vrot.slane %v128, 4
    %v130 = vadd.f32 %v128, %v129
    %v131 = vrot.slane %v130, 2
    %v132 = vadd.f32 %v130, %v131
    %v133 = vrot.slane %v132, 1
    %v134 = vadd.f32 %v132, %v133
    %v135 = vadd.f32 %v109, %v110
    %v136 = vrot.slane %v135, 4
    %v137 = vadd.f32 %v135, %v136
    %v138 = vrot.slane %v137, 2
    %v139 = vadd.f32 %v137, %v138
    %v140 = vrot.slane %v139, 1
    %v141 = vadd.f32 %v139, %v140
    %v142 = vadd.f32 %v111, %v112
    %v143 = vrot.slane %v142, 4
    %v144 = vadd.f32 %v142, %v143
    %v145 = vrot.slane %v144, 2
    %v146 = vadd.f32 %v144, %v145
    %v147 = vrot.slane %v146, 1
    %v148 = vadd.f32 %v146, %v147
    %v149 = vadd.f32 %v113, %v114
    %v150 = vrot.slane %v149, 4
    %v151 = vadd.f32 %v149, %v150
    %v152 = vrot.slane %v151, 2
    %v153 = vadd.f32 %v151, %v152
    %v154 = vrot.slane %v153, 1
    %v155 = vadd.f32 %v153, %v154
    %v156 = vadd.f32 %v115, %v116
    %v157 = vrot.slane %v156, 4
    %v158 = vadd.f32 %v156, %v157
    %v159 = vrot.slane %v158, 2
    %v160 = vadd.f32 %v158, %v159
    %v161 = vrot.slane %v160, 1
    %v162 = vadd.f32 %v160, %v161
    %v163 = vadd.f32 %v117, %v118
    %v164 = vrot.slane %v163, 4
    %v165 = vadd.f32 %v163, %v164
    %v166 = vrot.slane %v165, 2
    %v167 = vadd.f32 %v165, %v166
    %v168 = vrot.slane %v167, 1
    %v169 = vadd.f32 %v167, %v168
    %v170 = vadd.f32 %v119, %v120
    %v171 = vrot.slane %v170, 4
    %v172 = vadd.f32 %v170, %v171
    %v173 = vrot.slane %v172, 2
    %v174 = vadd.f32 %v172, %v173
    %v175 = vrot.slane %v174, 1
    %v176 = vadd.f32 %v174, %v175
    %v177 = vpack.c.bf16 %v105, %v105
    %v178 = vpack.c.bf16 %v106, %v106
    %v179 = vpack.c.bf16 %v107, %v107
    %v180 = vpack.c.bf16 %v108, %v108
    %v181 = vpack.c.bf16 %v109, %v109
    %v182 = vpack.c.bf16 %v110, %v110
    %v183 = vpack.c.bf16 %v111, %v111
    %v184 = vpack.c.bf16 %v112, %v112
    %v185 = vpack.c.bf16 %v113, %v113
    %v186 = vpack.c.bf16 %v114, %v114
    %v187 = vpack.c.bf16 %v115, %v115
    %v188 = vpack.c.bf16 %v116, %v116
    %v189 = vpack.c.bf16 %v117, %v117
    %v190 = vpack.c.bf16 %v118, %v118
    %v191 = vpack.c.bf16 %v119, %v119
    %v192 = vpack.c.bf16 %v120, %v120
    %v193 = vld [vmem:[#allocation10] sm:$0xf]
    %v194 = vld [vmem:[#allocation10 + $0x4] sm:$0xf]
    %v195 = vld [vmem:[#allocation10 + $0x8] sm:$0xf]
    %v196 = vld [vmem:[#allocation10 + $0xc] sm:$0xf]
    %v197 = vld [vmem:[#allocation10 + $0x10] sm:$0xf]
    %v198 = vld [vmem:[#allocation10 + $0x14] sm:$0xf]
    %v199 = vld [vmem:[#allocation10 + $0x18] sm:$0xf]
    %v200 = vld [vmem:[#allocation10 + $0x1c] sm:$0xf]
    %v201 = vld [vmem:[#allocation10 + $0x20] sm:$0xf]
    %v202 = vld [vmem:[#allocation10 + $0x24] sm:$0xf]
    %v203 = vld [vmem:[#allocation10 + $0x28] sm:$0xf]
    %v204 = vld [vmem:[#allocation10 + $0x2c] sm:$0xf]
    %v205 = vld [vmem:[#allocation10 + $0x30] sm:$0xf]
    %v206 = vld [vmem:[#allocation10 + $0x34] sm:$0xf]
    %v207 = vld [vmem:[#allocation10 + $0x38] sm:$0xf]
    %v208 = vld [vmem:[#allocation10 + $0x3c] sm:$0xf]
    %v225 = vunpack.c.l.b16 %v177
    %v226 = vunpack.c.l.b16 %v178
    %v227 = vunpack.c.l.b16 %v179
    %v228 = vunpack.c.l.b16 %v180
    %v229 = vunpack.c.l.b16 %v181
    %v230 = vunpack.c.l.b16 %v182
    %v231 = vunpack.c.l.b16 %v183
    %v232 = vunpack.c.l.b16 %v184
    %v233 = vunpack.c.l.b16 %v185
    %v234 = vunpack.c.l.b16 %v186
    %v235 = vunpack.c.l.b16 %v187
    %v236 = vunpack.c.l.b16 %v188
    %v237 = vunpack.c.l.b16 %v189
    %v238 = vunpack.c.l.b16 %v190
    %v239 = vunpack.c.l.b16 %v191
    %v240 = vunpack.c.l.b16 %v192
    %v241 = vpack.c.b16 %v226, %v225
    %v242 = vpack.c.b16 %v228, %v227
    %v243 = vpack.c.b16 %v230, %v229
    %v244 = vpack.c.b16 %v232, %v231
    %v245 = vpack.c.b16 %v234, %v233
    %v246 = vpack.c.b16 %v236, %v235
    %v247 = vpack.c.b16 %v238, %v237
    %v248 = vpack.c.b16 %v240, %v239
    %v273 = vunpack.c.l.b16 %v193
    %v274 = vunpack.c.l.b16 %v194
    %v275 = vunpack.c.l.b16 %v195
    %v276 = vunpack.c.l.b16 %v196
    %v277 = vunpack.c.l.b16 %v197
    %v278 = vunpack.c.l.b16 %v198
    %v279 = vunpack.c.l.b16 %v199
    %v280 = vunpack.c.l.b16 %v200
    %v281 = vunpack.c.l.b16 %v201
    %v282 = vunpack.c.l.b16 %v202
    %v283 = vunpack.c.l.b16 %v203
    %v284 = vunpack.c.l.b16 %v204
    %v285 = vunpack.c.l.b16 %v205
    %v286 = vunpack.c.l.b16 %v206
    %v287 = vunpack.c.l.b16 %v207
    %v288 = vunpack.c.l.b16 %v208
    %v289 = vpack.c.b16 %v274, %v273
    %v290 = vpack.c.b16 %v276, %v275
    %v291 = vpack.c.b16 %v278, %v277
    %v292 = vpack.c.b16 %v280, %v279
    %v293 = vpack.c.b16 %v282, %v281
    %v294 = vpack.c.b16 %v284, %v283
    %v295 = vpack.c.b16 %v286, %v285
    %v296 = vpack.c.b16 %v288, %v287
    %305 = vmatpush.bf16.msra.mxu0 %v296
    %306 = vmatpush.bf16.msra.mxu0 %v295
    %307 = vmatpush.bf16.msra.mxu0 %v294
    %308 = vmatpush.bf16.msra.mxu0 %v293
    %309 = vmatpush.bf16.msra.mxu0 %v292
    %310 = vmatpush.bf16.msra.mxu0 %v291
    %311 = vmatpush.bf16.msra.mxu0 %v290
    %312 = vmatpush.bf16.msra.mxu0 %v289
    %313 = vmatmul.bf16.gmra.mxu0 %v241
    %v314 = vpop.f32.mrf.mxu0
    %v315 = vadd.f32 0.0, %v314
    %v316 = vpop.f32.mrf.mxu0
    %v317 = vadd.f32 0.0, %v316
    %318 = vmatmul.bf16.gmra.mxu0 %v242
    %v319 = vpop.f32.mrf.mxu0
    %v320 = vadd.f32 0.0, %v319
    %v321 = vpop.f32.mrf.mxu0
    %v322 = vadd.f32 0.0, %v321
    %323 = vmatmul.bf16.gmra.mxu0 %v243
    %v324 = vpop.f32.mrf.mxu0
    %v325 = vadd.f32 0.0, %v324
    %v326 = vpop.f32.mrf.mxu0
    %v327 = vadd.f32 0.0, %v326
    %328 = vmatmul.bf16.gmra.mxu0 %v244
    %v329 = vpop.f32.mrf.mxu0
    %v330 = vadd.f32 0.0, %v329
    %v331 = vpop.f32.mrf.mxu0
    %v332 = vadd.f32 0.0, %v331
    %333 = vmatmul.bf16.gmra.mxu0 %v245
    %v334 = vpop.f32.mrf.mxu0
    %v335 = vadd.f32 0.0, %v334
    %v336 = vpop.f32.mrf.mxu0
    %v337 = vadd.f32 0.0, %v336
    %338 = vmatmul.bf16.gmra.mxu0 %v246
    %v339 = vpop.f32.mrf.mxu0
    %v340 = vadd.f32 0.0, %v339
    %v341 = vpop.f32.mrf.mxu0
    %v342 = vadd.f32 0.0, %v341
    %343 = vmatmul.bf16.gmra.mxu0 %v247
    %v344 = vpop.f32.mrf.mxu0
    %v345 = vadd.f32 0.0, %v344
    %v346 = vpop.f32.mrf.mxu0
    %v347 = vadd.f32 0.0, %v346
    %348 = vmatmul.bf16.gmra.mxu0 %v248
    %v349 = vpop.f32.mrf.mxu0
    %v350 = vadd.f32 0.0, %v349
    %v351 = vpop.f32.mrf.mxu0
    %v352 = vadd.f32 0.0, %v351
    %353 = vdwg.mxu0
    %v354 = vld [vmem:[#allocation2] sm:$0xff]
    %v355 = vpack.c.bf16 %v354, %v354
    %v356 = vpack.c.bf16 %v127, %v127
    %v357 = vpack.c.bf16 %v134, %v134
    %v358 = vpack.c.bf16 %v141, %v141
    %v359 = vpack.c.bf16 %v148, %v148
    %v360 = vpack.c.bf16 %v155, %v155
    %v361 = vpack.c.bf16 %v162, %v162
    %v362 = vpack.c.bf16 %v169, %v169
    %v363 = vpack.c.bf16 %v176, %v176
    %v372 = vperm.slane %v356, 0
    %v373 = vperm.slane %v357, 0
    %v374 = vperm.slane %v358, 0
    %v375 = vperm.slane %v359, 0
    %v376 = vperm.slane %v360, 0
    %v377 = vperm.slane %v361, 0
    %v378 = vperm.slane %v362, 0
    %v379 = vperm.slane %v363, 0
    %v380 = vunpack.c.l.b16 %v372
    %v381 = vunpack.c.l.b16 %v373
    %v382 = vunpack.c.l.b16 %v374
    %v383 = vunpack.c.l.b16 %v375
    %v384 = vunpack.c.l.b16 %v376
    %v385 = vunpack.c.l.b16 %v377
    %v386 = vunpack.c.l.b16 %v378
    %v387 = vunpack.c.l.b16 %v379
    %vm388 = vcmask 1041409
    %v389 = vsel %vm388, %v381, %v380
    %vm390 = vcmask 1042434
    %v391 = vsel %vm390, %v382, %v389
    %vm392 = vcmask 1043459
    %v393 = vsel %vm392, %v383, %v391
    %vm394 = vcmask 1044484
    %v395 = vsel %vm394, %v384, %v393
    %vm396 = vcmask 1045509
    %v397 = vsel %vm396, %v385, %v395
    %vm398 = vcmask 1046534
    %v399 = vsel %vm398, %v386, %v397
    %vm400 = vcmask 1047559
    %v401 = vsel %vm400, %v387, %v399
    %v402 = vpack.c.b16 %v401, %v401
    %v404 = vld [vmem:[#allocation8] sm:$0xff]
    %v405 = vld [vmem:[#allocation8 + $0x8] sm:$0xff]
    %v406 = vld [vmem:[#allocation8 + $0x10] sm:$0xff]
    %v407 = vld [vmem:[#allocation8 + $0x18] sm:$0xff]
    %v408 = vld [vmem:[#allocation8 + $0x20] sm:$0xff]
    %v409 = vld [vmem:[#allocation8 + $0x28] sm:$0xff]
    %v410 = vld [vmem:[#allocation8 + $0x30] sm:$0xff]
    %v411 = vld [vmem:[#allocation8 + $0x38] sm:$0xff]
    %v412 = vld [vmem:[#allocation8 + $0x40] sm:$0xff]
    %v413 = vld [vmem:[#allocation8 + $0x48] sm:$0xff]
    %v414 = vld [vmem:[#allocation8 + $0x50] sm:$0xff]
    %v415 = vld [vmem:[#allocation8 + $0x58] sm:$0xff]
    %v416 = vld [vmem:[#allocation8 + $0x60] sm:$0xff]
    %v417 = vld [vmem:[#allocation8 + $0x68] sm:$0xff]
    %v418 = vld [vmem:[#allocation8 + $0x70] sm:$0xff]
    %v419 = vld [vmem:[#allocation8 + $0x78] sm:$0xff]
    %v420 = vld [vmem:[#allocation8 + $0x80] sm:$0xff]
    %v421 = vld [vmem:[#allocation8 + $0x88] sm:$0xff]
    %v422 = vld [vmem:[#allocation8 + $0x90] sm:$0xff]
    %v423 = vld [vmem:[#allocation8 + $0x98] sm:$0xff]
    %v424 = vld [vmem:[#allocation8 + $0xa0] sm:$0xff]
    %v425 = vld [vmem:[#allocation8 + $0xa8] sm:$0xff]
    %v426 = vld [vmem:[#allocation8 + $0xb0] sm:$0xff]
    %v427 = vld [vmem:[#allocation8 + $0xb8] sm:$0xff]
    %v428 = vld [vmem:[#allocation8 + $0xc0] sm:$0xff]
    %v429 = vld [vmem:[#allocation8 + $0xc8] sm:$0xff]
    %v430 = vld [vmem:[#allocation8 + $0xd0] sm:$0xff]
    %v431 = vld [vmem:[#allocation8 + $0xd8] sm:$0xff]
    %v432 = vld [vmem:[#allocation8 + $0xe0] sm:$0xff]
    %v433 = vld [vmem:[#allocation8 + $0xe8] sm:$0xff]
    %v434 = vld [vmem:[#allocation8 + $0xf0] sm:$0xff]
    %v435 = vld [vmem:[#allocation8 + $0xf8] sm:$0xff]
    %v436 = vld [vmem:[#allocation8 + $0x100] sm:$0xff]
    %v437 = vld [vmem:[#allocation8 + $0x108] sm:$0xff]
    %v438 = vld [vmem:[#allocation8 + $0x110] sm:$0xff]
    %v439 = vld [vmem:[#allocation8 + $0x118] sm:$0xff]
    %v440 = vld [vmem:[#allocation8 + $0x120] sm:$0xff]
    %v441 = vld [vmem:[#allocation8 + $0x128] sm:$0xff]
    %v442 = vld [vmem:[#allocation8 + $0x130] sm:$0xff]
    %v443 = vld [vmem:[#allocation8 + $0x138] sm:$0xff]
    %v444 = vld [vmem:[#allocation8 + $0x140] sm:$0xff]
    %v445 = vld [vmem:[#allocation8 + $0x148] sm:$0xff]
    %v446 = vld [vmem:[#allocation8 + $0x150] sm:$0xff]
    %v447 = vld [vmem:[#allocation8 + $0x158] sm:$0xff]
    %v448 = vld [vmem:[#allocation8 + $0x160] sm:$0xff]
    %v449 = vld [vmem:[#allocation8 + $0x168] sm:$0xff]
    %v450 = vld [vmem:[#allocation8 + $0x170] sm:$0xff]
    %v451 = vld [vmem:[#allocation8 + $0x178] sm:$0xff]
    %v452 = vld [vmem:[#allocation8 + $0x180] sm:$0xff]
    %v453 = vld [vmem:[#allocation8 + $0x188] sm:$0xff]
    %v454 = vld [vmem:[#allocation8 + $0x190] sm:$0xff]
    %v455 = vld [vmem:[#allocation8 + $0x198] sm:$0xff]
    %v456 = vld [vmem:[#allocation8 + $0x1a0] sm:$0xff]
    %v457 = vld [vmem:[#allocation8 + $0x1a8] sm:$0xff]
    %v458 = vld [vmem:[#allocation8 + $0x1b0] sm:$0xff]
    %v459 = vld [vmem:[#allocation8 + $0x1b8] sm:$0xff]
    %v460 = vld [vmem:[#allocation8 + $0x1c0] sm:$0xff]
    %v461 = vld [vmem:[#allocation8 + $0x1c8] sm:$0xff]
    %v462 = vld [vmem:[#allocation8 + $0x1d0] sm:$0xff]
    %v463 = vld [vmem:[#allocation8 + $0x1d8] sm:$0xff]
    %v464 = vld [vmem:[#allocation8 + $0x1e0] sm:$0xff]
    %v465 = vld [vmem:[#allocation8 + $0x1e8] sm:$0xff]
    %v466 = vld [vmem:[#allocation8 + $0x1f0] sm:$0xff]
    %v467 = vld [vmem:[#allocation8 + $0x1f8] sm:$0xff]
    %v468 = vld [vmem:[%s5] sm:$0xf]
    %v470 = vperm.slane %v468, 0
    %v471 = vperm.slane %v468, 1
    %v472 = vperm.slane %v468, 2
    %v473 = vperm.slane %v468, 3
    %v542 = vunpack.c.l.b16 %v404
    %v543 = vunpack.c.h.b16 %v404
    %v544 = vunpack.c.l.b16 %v405
    %v545 = vunpack.c.h.b16 %v405
    %v546 = vunpack.c.l.b16 %v406
    %v547 = vunpack.c.h.b16 %v406
    %v548 = vunpack.c.l.b16 %v407
    %v549 = vunpack.c.h.b16 %v407
    %v550 = vunpack.c.l.b16 %v408
    %v551 = vunpack.c.h.b16 %v408
    %v552 = vunpack.c.l.b16 %v409
    %v553 = vunpack.c.h.b16 %v409
    %v554 = vunpack.c.l.b16 %v410
    %v555 = vunpack.c.h.b16 %v410
    %v556 = vunpack.c.l.b16 %v411
    %v557 = vunpack.c.h.b16 %v411
    %v558 = vunpack.c.l.b16 %v412
    %v559 = vunpack.c.h.b16 %v412
    %v560 = vunpack.c.l.b16 %v413
    %v561 = vunpack.c.h.b16 %v413
    %v562 = vunpack.c.l.b16 %v414
    %v563 = vunpack.c.h.b16 %v414
    %v564 = vunpack.c.l.b16 %v415
    %v565 = vunpack.c.h.b16 %v415
    %v566 = vunpack.c.l.b16 %v416
    %v567 = vunpack.c.h.b16 %v416
    %v568 = vunpack.c.l.b16 %v417
    %v569 = vunpack.c.h.b16 %v417
    %v570 = vunpack.c.l.b16 %v418
    %v571 = vunpack.c.h.b16 %v418
    %v572 = vunpack.c.l.b16 %v419
    %v573 = vunpack.c.h.b16 %v419
    %v574 = vunpack.c.l.b16 %v420
    %v575 = vunpack.c.h.b16 %v420
    %v576 = vunpack.c.l.b16 %v421
    %v577 = vunpack.c.h.b16 %v421
    %v578 = vunpack.c.l.b16 %v422
    %v579 = vunpack.c.h.b16 %v422
    %v580 = vunpack.c.l.b16 %v423
    %v581 = vunpack.c.h.b16 %v423
    %v582 = vunpack.c.l.b16 %v424
    %v583 = vunpack.c.h.b16 %v424
    %v584 = vunpack.c.l.b16 %v425
    %v585 = vunpack.c.h.b16 %v425
    %v586 = vunpack.c.l.b16 %v426
    %v587 = vunpack.c.h.b16 %v426
    %v588 = vunpack.c.l.b16 %v427
    %v589 = vunpack.c.h.b16 %v427
    %v590 = vunpack.c.l.b16 %v428
    %v591 = vunpack.c.h.b16 %v428
    %v592 = vunpack.c.l.b16 %v429
    %v593 = vunpack.c.h.b16 %v429
    %v594 = vunpack.c.l.b16 %v430
    %v595 = vunpack.c.h.b16 %v430
    %v596 = vunpack.c.l.b16 %v431
    %v597 = vunpack.c.h.b16 %v431
    %v598 = vunpack.c.l.b16 %v432
    %v599 = vunpack.c.h.b16 %v432
    %v600 = vunpack.c.l.b16 %v433
    %v601 = vunpack.c.h.b16 %v433
    %v602 = vunpack.c.l.b16 %v434
    %v603 = vunpack.c.h.b16 %v434
    %v604 = vunpack.c.l.b16 %v435
    %v605 = vunpack.c.h.b16 %v435
    %v606 = vunpack.c.l.b16 %v436
    %v607 = vunpack.c.h.b16 %v436
    %v608 = vunpack.c.l.b16 %v437
    %v609 = vunpack.c.h.b16 %v437
    %v610 = vunpack.c.l.b16 %v438
    %v611 = vunpack.c.h.b16 %v438
    %v612 = vunpack.c.l.b16 %v439
    %v613 = vunpack.c.h.b16 %v439
    %v614 = vunpack.c.l.b16 %v440
    %v615 = vunpack.c.h.b16 %v440
    %v616 = vunpack.c.l.b16 %v441
    %v617 = vunpack.c.h.b16 %v441
    %v618 = vunpack.c.l.b16 %v442
    %v619 = vunpack.c.h.b16 %v442
    %v620 = vunpack.c.l.b16 %v443
    %v621 = vunpack.c.h.b16 %v443
    %v622 = vunpack.c.l.b16 %v444
    %v623 = vunpack.c.h.b16 %v444
    %v624 = vunpack.c.l.b16 %v445
    %v625 = vunpack.c.h.b16 %v445
    %v626 = vunpack.c.l.b16 %v446
    %v627 = vunpack.c.h.b16 %v446
    %v628 = vunpack.c.l.b16 %v447
    %v629 = vunpack.c.h.b16 %v447
    %v630 = vunpack.c.l.b16 %v448
    %v631 = vunpack.c.h.b16 %v448
    %v632 = vunpack.c.l.b16 %v449
    %v633 = vunpack.c.h.b16 %v449
    %v634 = vunpack.c.l.b16 %v450
    %v635 = vunpack.c.h.b16 %v450
    %v636 = vunpack.c.l.b16 %v451
    %v637 = vunpack.c.h.b16 %v451
    %v638 = vunpack.c.l.b16 %v452
    %v639 = vunpack.c.h.b16 %v452
    %v640 = vunpack.c.l.b16 %v453
    %v641 = vunpack.c.h.b16 %v453
    %v642 = vunpack.c.l.b16 %v454
    %v643 = vunpack.c.h.b16 %v454
    %v644 = vunpack.c.l.b16 %v455
    %v645 = vunpack.c.h.b16 %v455
    %v646 = vunpack.c.l.b16 %v456
    %v647 = vunpack.c.h.b16 %v456
    %v648 = vunpack.c.l.b16 %v457
    %v649 = vunpack.c.h.b16 %v457
    %v650 = vunpack.c.l.b16 %v458
    %v651 = vunpack.c.h.b16 %v458
    %v652 = vunpack.c.l.b16 %v459
    %v653 = vunpack.c.h.b16 %v459
    %v654 = vunpack.c.l.b16 %v460
    %v655 = vunpack.c.h.b16 %v460
    %v656 = vunpack.c.l.b16 %v461
    %v657 = vunpack.c.h.b16 %v461
    %v658 = vunpack.c.l.b16 %v462
    %v659 = vunpack.c.h.b16 %v462
    %v660 = vunpack.c.l.b16 %v463
    %v661 = vunpack.c.h.b16 %v463
    %v662 = vunpack.c.l.b16 %v464
    %v663 = vunpack.c.h.b16 %v464
    %v664 = vunpack.c.l.b16 %v465
    %v665 = vunpack.c.h.b16 %v465
    %v666 = vunpack.c.l.b16 %v466
    %v667 = vunpack.c.h.b16 %v466
    %v668 = vunpack.c.l.b16 %v467
    %v669 = vunpack.c.h.b16 %v467
    %v670 = vpack.c.b16 %v546, %v542
    %v671 = vpack.c.b16 %v547, %v543
    %v672 = vpack.c.b16 %v548, %v544
    %v673 = vpack.c.b16 %v549, %v545
    %v674 = vpack.c.b16 %v554, %v550
    %v675 = vpack.c.b16 %v555, %v551
    %v676 = vpack.c.b16 %v556, %v552
    %v677 = vpack.c.b16 %v557, %v553
    %v678 = vpack.c.b16 %v562, %v558
    %v679 = vpack.c.b16 %v563, %v559
    %v680 = vpack.c.b16 %v564, %v560
    %v681 = vpack.c.b16 %v565, %v561
    %v682 = vpack.c.b16 %v570, %v566
    %v683 = vpack.c.b16 %v571, %v567
    %v684 = vpack.c.b16 %v572, %v568
    %v685 = vpack.c.b16 %v573, %v569
    %v686 = vpack.c.b16 %v578, %v574
    %v687 = vpack.c.b16 %v579, %v575
    %v688 = vpack.c.b16 %v580, %v576
    %v689 = vpack.c.b16 %v581, %v577
    %v690 = vpack.c.b16 %v586, %v582
    %v691 = vpack.c.b16 %v587, %v583
    %v692 = vpack.c.b16 %v588, %v584
    %v693 = vpack.c.b16 %v589, %v585
    %v694 = vpack.c.b16 %v594, %v590
    %v695 = vpack.c.b16 %v595, %v591
    %v696 = vpack.c.b16 %v596, %v592
    %v697 = vpack.c.b16 %v597, %v593
    %v698 = vpack.c.b16 %v602, %v598
    %v699 = vpack.c.b16 %v603, %v599
    %v700 = vpack.c.b16 %v604, %v600
    %v701 = vpack.c.b16 %v605, %v601
    %v702 = vpack.c.b16 %v610, %v606
    %v703 = vpack.c.b16 %v611, %v607
    %v704 = vpack.c.b16 %v612, %v608
    %v705 = vpack.c.b16 %v613, %v609
    %v706 = vpack.c.b16 %v618, %v614
    %v707 = vpack.c.b16 %v619, %v615
    %v708 = vpack.c.b16 %v620, %v616
    %v709 = vpack.c.b16 %v621, %v617
    %v710 = vpack.c.b16 %v626, %v622
    %v711 = vpack.c.b16 %v627, %v623
    %v712 = vpack.c.b16 %v628, %v624
    %v713 = vpack.c.b16 %v629, %v625
    %v714 = vpack.c.b16 %v634, %v630
    %v715 = vpack.c.b16 %v635, %v631
    %v716 = vpack.c.b16 %v636, %v632
    %v717 = vpack.c.b16 %v637, %v633
    %v718 = vpack.c.b16 %v642, %v638
    %v719 = vpack.c.b16 %v643, %v639
    %v720 = vpack.c.b16 %v644, %v640
    %v721 = vpack.c.b16 %v645, %v641
    %v722 = vpack.c.b16 %v650, %v646
    %v723 = vpack.c.b16 %v651, %v647
    %v724 = vpack.c.b16 %v652, %v648
    %v725 = vpack.c.b16 %v653, %v649
    %v726 = vpack.c.b16 %v658, %v654
    %v727 = vpack.c.b16 %v659, %v655
    %v728 = vpack.c.b16 %v660, %v656
    %v729 = vpack.c.b16 %v661, %v657
    %v730 = vpack.c.b16 %v666, %v662
    %v731 = vpack.c.b16 %v667, %v663
    %v732 = vpack.c.b16 %v668, %v664
    %v733 = vpack.c.b16 %v669, %v665
    %798 = vmatpush.bf16.msra.mxu0 %v698
    %799 = vmatpush.bf16.msra.mxu0 %v694
    %800 = vmatpush.bf16.msra.mxu0 %v690
    %801 = vmatpush.bf16.msra.mxu0 %v686
    %802 = vmatpush.bf16.msra.mxu0 %v682
    %803 = vmatpush.bf16.msra.mxu0 %v678
    %804 = vmatpush.bf16.msra.mxu0 %v674
    %805 = vmatpush.bf16.msra.mxu0 %v670
    %806 = vmatmul.bf16.gmra.mxu0 %v355
    %v807 = vpop.f32.mrf.mxu0
    %v808 = vadd.f32 %v470, %v807
    %v809 = vpop.f32.mrf.mxu0
    %810 = vdwg.mxu0
    %811 = vmatpush.bf16.msra.mxu0 %v730
    %812 = vmatpush.bf16.msra.mxu0 %v726
    %813 = vmatpush.bf16.msra.mxu0 %v722
    %814 = vmatpush.bf16.msra.mxu0 %v718
    %815 = vmatpush.bf16.msra.mxu0 %v714
    %816 = vmatpush.bf16.msra.mxu0 %v710
    %817 = vmatpush.bf16.msra.mxu0 %v706
    %818 = vmatpush.bf16.msra.mxu0 %v702
    %819 = vmatmul.bf16.gmra.mxu0 %v402
    %v820 = vpop.f32.mrf.mxu0
    %v821 = vadd.f32 %v808, %v820
    %v822 = vpop.f32.mrf.mxu0
    %823 = vdwg.mxu0
    %824 = vmatpush.bf16.msra.mxu0 %v699
    %825 = vmatpush.bf16.msra.mxu0 %v695
    %826 = vmatpush.bf16.msra.mxu0 %v691
    %827 = vmatpush.bf16.msra.mxu0 %v687
    %828 = vmatpush.bf16.msra.mxu0 %v683
    %829 = vmatpush.bf16.msra.mxu0 %v679
    %830 = vmatpush.bf16.msra.mxu0 %v675
    %831 = vmatpush.bf16.msra.mxu0 %v671
    %832 = vmatmul.bf16.gmra.mxu0 %v355
    %v833 = vpop.f32.mrf.mxu0
    %v834 = vadd.f32 %v471, %v833
    %v835 = vpop.f32.mrf.mxu0
    %836 = vdwg.mxu0
    %837 = vmatpush.bf16.msra.mxu0 %v731
    %838 = vmatpush.bf16.msra.mxu0 %v727
    %839 = vmatpush.bf16.msra.mxu0 %v723
    %840 = vmatpush.bf16.msra.mxu0 %v719
    %841 = vmatpush.bf16.msra.mxu0 %v715
    %842 = vmatpush.bf16.msra.mxu0 %v711
    %843 = vmatpush.bf16.msra.mxu0 %v707
    %844 = vmatpush.bf16.msra.mxu0 %v703
    %845 = vmatmul.bf16.gmra.mxu0 %v402
    %v846 = vpop.f32.mrf.mxu0
    %v847 = vadd.f32 %v834, %v846
    %v848 = vpop.f32.mrf.mxu0
    %849 = vdwg.mxu0
    %850 = vmatpush.bf16.msra.mxu0 %v700
    %851 = vmatpush.bf16.msra.mxu0 %v696
    %852 = vmatpush.bf16.msra.mxu0 %v692
    %853 = vmatpush.bf16.msra.mxu0 %v688
    %854 = vmatpush.bf16.msra.mxu0 %v684
    %855 = vmatpush.bf16.msra.mxu0 %v680
    %856 = vmatpush.bf16.msra.mxu0 %v676
    %857 = vmatpush.bf16.msra.mxu0 %v672
    %858 = vmatmul.bf16.gmra.mxu0 %v355
    %v859 = vpop.f32.mrf.mxu0
    %v860 = vadd.f32 %v472, %v859
    %v861 = vpop.f32.mrf.mxu0
    %862 = vdwg.mxu0
    %863 = vmatpush.bf16.msra.mxu0 %v732
    %864 = vmatpush.bf16.msra.mxu0 %v728
    %865 = vmatpush.bf16.msra.mxu0 %v724
    %866 = vmatpush.bf16.msra.mxu0 %v720
    %867 = vmatpush.bf16.msra.mxu0 %v716
    %868 = vmatpush.bf16.msra.mxu0 %v712
    %869 = vmatpush.bf16.msra.mxu0 %v708
    %870 = vmatpush.bf16.msra.mxu0 %v704
    %871 = vmatmul.bf16.gmra.mxu0 %v402
    %v872 = vpop.f32.mrf.mxu0
    %v873 = vadd.f32 %v860, %v872
    %v874 = vpop.f32.mrf.mxu0
    %875 = vdwg.mxu0
    %876 = vmatpush.bf16.msra.mxu0 %v701
    %877 = vmatpush.bf16.msra.mxu0 %v697
    %878 = vmatpush.bf16.msra.mxu0 %v693
    %879 = vmatpush.bf16.msra.mxu0 %v689
    %880 = vmatpush.bf16.msra.mxu0 %v685
    %881 = vmatpush.bf16.msra.mxu0 %v681
    %882 = vmatpush.bf16.msra.mxu0 %v677
    %883 = vmatpush.bf16.msra.mxu0 %v673
    %884 = vmatmul.bf16.gmra.mxu0 %v355
    %v885 = vpop.f32.mrf.mxu0
    %v886 = vadd.f32 %v473, %v885
    %v887 = vpop.f32.mrf.mxu0
    %888 = vdwg.mxu0
    %889 = vmatpush.bf16.msra.mxu0 %v733
    %890 = vmatpush.bf16.msra.mxu0 %v729
    %891 = vmatpush.bf16.msra.mxu0 %v725
    %892 = vmatpush.bf16.msra.mxu0 %v721
    %893 = vmatpush.bf16.msra.mxu0 %v717
    %894 = vmatpush.bf16.msra.mxu0 %v713
    %895 = vmatpush.bf16.msra.mxu0 %v709
    %896 = vmatpush.bf16.msra.mxu0 %v705
    %897 = vmatmul.bf16.gmra.mxu0 %v402
    %v898 = vpop.f32.mrf.mxu0
    %v899 = vadd.f32 %v886, %v898
    %v900 = vpop.f32.mrf.mxu0
    %901 = vdwg.mxu0
    %v902 = vxor.u32 %v821, 2147483648
    %v903 = vmul.f32 %v902, 1.442695
    %v904 = vpow.pop %v903
    %v905 = vadd.f32 %v904, 1.0
    %v906 = vrcp.pop %v905
    %v907 = vmul.f32 %v905, %v906
    %v908 = vsub.f32 1.0, %v907
    %v909 = vmul.f32 %v906, %v908
    %v910 = vadd.f32 %v906, %v909
    %vm911 = vweird.f32 %v905
    %vm912 = vweird.f32 %v906
    %vm913 = vmor %vm911, %vm912
    %v914 = vsel %vm913, %v906, %v910
    %v915 = vand.u32 2147483647, %v905
    %vm916 = vcmp.eq.f32.partialorder %v915, 8.507059e+37
    %v917 = vand.u32 %v905, 2147483648
    %v918 = vor.u32 1.1754944e-38, %v917
    %v919 = vsel %vm916, %v918, %v914
    %v920 = vmul.f32 1.0, %v919
    %v921 = vxor.u32 %v847, 2147483648
    %v922 = vmul.f32 %v921, 1.442695
    %v923 = vpow.pop %v922
    %v924 = vadd.f32 %v923, 1.0
    %v925 = vrcp.pop %v924
    %v926 = vmul.f32 %v924, %v925
    %v927 = vsub.f32 1.0, %v926
    %v928 = vmul.f32 %v925, %v927
    %v929 = vadd.f32 %v925, %v928
    %vm930 = vweird.f32 %v924
    %vm931 = vweird.f32 %v925
    %vm932 = vmor %vm930, %vm931
    %v933 = vsel %vm932, %v925, %v929
    %v934 = vand.u32 2147483647, %v924
    %vm935 = vcmp.eq.f32.partialorder %v934, 8.507059e+37
    %v936 = vand.u32 %v924, 2147483648
    %v937 = vor.u32 1.1754944e-38, %v936
    %v938 = vsel %vm935, %v937, %v933
    %v939 = vmul.f32 1.0, %v938
    %v940 = vtanh.pop %v873
    %v942 = vrot.slane %v899, 1
    %v943 = vrot.slane %v899, 2
    %v944 = vrot.slane %v899, 3
    %v945 = vrot.slane %v899, 4
    %v946 = vrot.slane %v899, 5
    %v947 = vrot.slane %v899, 6
    %v948 = vrot.slane %v899, 7
    %v949 = vperm.slane %v899, 0
    %v950 = vperm.slane %v942, 0
    %v951 = vperm.slane %v943, 0
    %v952 = vperm.slane %v944, 0
    %v953 = vperm.slane %v945, 0
    %v954 = vperm.slane %v946, 0
    %v955 = vperm.slane %v947, 0
    %v956 = vperm.slane %v948, 0
    %v965 = vadd.f32 %v315, %v949
    %v966 = vadd.f32 %v317, %v949
    %v967 = vadd.f32 %v320, %v950
    %v968 = vadd.f32 %v322, %v950
    %v969 = vadd.f32 %v325, %v951
    %v970 = vadd.f32 %v327, %v951
    %v971 = vadd.f32 %v330, %v952
    %v972 = vadd.f32 %v332, %v952
    %v973 = vadd.f32 %v335, %v953
    %v974 = vadd.f32 %v337, %v953
    %v975 = vadd.f32 %v340, %v954
    %v976 = vadd.f32 %v342, %v954
    %v977 = vadd.f32 %v345, %v955
    %v978 = vadd.f32 %v347, %v955
    %v979 = vadd.f32 %v350, %v956
    %v980 = vadd.f32 %v352, %v956
    %v981 = vxor.u32 %v965, 2147483648
    %v982 = vxor.u32 %v966, 2147483648
    %v983 = vxor.u32 %v967, 2147483648
    %v984 = vxor.u32 %v968, 2147483648
    %v985 = vxor.u32 %v969, 2147483648
    %v986 = vxor.u32 %v970, 2147483648
    %v987 = vxor.u32 %v971, 2147483648
    %v988 = vxor.u32 %v972, 2147483648
    %v989 = vxor.u32 %v973, 2147483648
    %v990 = vxor.u32 %v974, 2147483648
    %v991 = vxor.u32 %v975, 2147483648
    %v992 = vxor.u32 %v976, 2147483648
    %v993 = vxor.u32 %v977, 2147483648
    %v994 = vxor.u32 %v978, 2147483648
    %v995 = vxor.u32 %v979, 2147483648
    %v996 = vxor.u32 %v980, 2147483648
    %v997 = vmul.f32 %v981, 1.442695
    %v998 = vpow.pop %v997
    %v999 = vmul.f32 %v982, 1.442695
    %v1000 = vpow.pop %v999
    %v1001 = vmul.f32 %v983, 1.442695
    %v1002 = vpow.pop %v1001
    %v1003 = vmul.f32 %v984, 1.442695
    %v1004 = vpow.pop %v1003
    %v1005 = vmul.f32 %v985, 1.442695
    %v1006 = vpow.pop %v1005
    %v1007 = vmul.f32 %v986, 1.442695
    %v1008 = vpow.pop %v1007
    %v1009 = vmul.f32 %v987, 1.442695
    %v1010 = vpow.pop %v1009
    %v1011 = vmul.f32 %v988, 1.442695
    %v1012 = vpow.pop %v1011
    %v1013 = vmul.f32 %v989, 1.442695
    %v1014 = vpow.pop %v1013
    %v1015 = vmul.f32 %v990, 1.442695
    %v1016 = vpow.pop %v1015
    %v1017 = vmul.f32 %v991, 1.442695
    %v1018 = vpow.pop %v1017
    %v1019 = vmul.f32 %v992, 1.442695
    %v1020 = vpow.pop %v1019
    %v1021 = vmul.f32 %v993, 1.442695
    %v1022 = vpow.pop %v1021
    %v1023 = vmul.f32 %v994, 1.442695
    %v1024 = vpow.pop %v1023
    %v1025 = vmul.f32 %v995, 1.442695
    %v1026 = vpow.pop %v1025
    %v1027 = vmul.f32 %v996, 1.442695
    %v1028 = vpow.pop %v1027
    %v1029 = vadd.f32 %v998, 1.0
    %v1030 = vadd.f32 %v1000, 1.0
    %v1031 = vadd.f32 %v1002, 1.0
    %v1032 = vadd.f32 %v1004, 1.0
    %v1033 = vadd.f32 %v1006, 1.0
    %v1034 = vadd.f32 %v1008, 1.0
    %v1035 = vadd.f32 %v1010, 1.0
    %v1036 = vadd.f32 %v1012, 1.0
    %v1037 = vadd.f32 %v1014, 1.0
    %v1038 = vadd.f32 %v1016, 1.0
    %v1039 = vadd.f32 %v1018, 1.0
    %v1040 = vadd.f32 %v1020, 1.0
    %v1041 = vadd.f32 %v1022, 1.0
    %v1042 = vadd.f32 %v1024, 1.0
    %v1043 = vadd.f32 %v1026, 1.0
    %v1044 = vadd.f32 %v1028, 1.0
    %v1045 = vrcp.pop %v1029
    %v1046 = vmul.f32 %v1029, %v1045
    %v1047 = vsub.f32 1.0, %v1046
    %v1048 = vmul.f32 %v1045, %v1047
    %v1049 = vadd.f32 %v1045, %v1048
    %vm1050 = vweird.f32 %v1029
    %vm1051 = vweird.f32 %v1045
    %vm1052 = vmor %vm1050, %vm1051
    %v1053 = vsel %vm1052, %v1045, %v1049
    %v1054 = vand.u32 2147483647, %v1029
    %vm1055 = vcmp.eq.f32.partialorder %v1054, 8.507059e+37
    %v1056 = vand.u32 %v1029, 2147483648
    %v1057 = vor.u32 1.1754944e-38, %v1056
    %v1058 = vsel %vm1055, %v1057, %v1053
    %v1059 = vmul.f32 1.0, %v1058
    %v1060 = vrcp.pop %v1030
    %v1061 = vmul.f32 %v1030, %v1060
    %v1062 = vsub.f32 1.0, %v1061
    %v1063 = vmul.f32 %v1060, %v1062
    %v1064 = vadd.f32 %v1060, %v1063
    %vm1065 = vweird.f32 %v1030
    %vm1066 = vweird.f32 %v1060
    %vm1067 = vmor %vm1065, %vm1066
    %v1068 = vsel %vm1067, %v1060, %v1064
    %v1069 = vand.u32 2147483647, %v1030
    %vm1070 = vcmp.eq.f32.partialorder %v1069, 8.507059e+37
    %v1071 = vand.u32 %v1030, 2147483648
    %v1072 = vor.u32 1.1754944e-38, %v1071
    %v1073 = vsel %vm1070, %v1072, %v1068
    %v1074 = vmul.f32 1.0, %v1073
    %v1075 = vrcp.pop %v1031
    %v1076 = vmul.f32 %v1031, %v1075
    %v1077 = vsub.f32 1.0, %v1076
    %v1078 = vmul.f32 %v1075, %v1077
    %v1079 = vadd.f32 %v1075, %v1078
    %vm1080 = vweird.f32 %v1031
    %vm1081 = vweird.f32 %v1075
    %vm1082 = vmor %vm1080, %vm1081
    %v1083 = vsel %vm1082, %v1075, %v1079
    %v1084 = vand.u32 2147483647, %v1031
    %vm1085 = vcmp.eq.f32.partialorder %v1084, 8.507059e+37
    %v1086 = vand.u32 %v1031, 2147483648
    %v1087 = vor.u32 1.1754944e-38, %v1086
    %v1088 = vsel %vm1085, %v1087, %v1083
    %v1089 = vmul.f32 1.0, %v1088
    %v1090 = vrcp.pop %v1032
    %v1091 = vmul.f32 %v1032, %v1090
    %v1092 = vsub.f32 1.0, %v1091
    %v1093 = vmul.f32 %v1090, %v1092
    %v1094 = vadd.f32 %v1090, %v1093
    %vm1095 = vweird.f32 %v1032
    %vm1096 = vweird.f32 %v1090
    %vm1097 = vmor %vm1095, %vm1096
    %v1098 = vsel %vm1097, %v1090, %v1094
    %v1099 = vand.u32 2147483647, %v1032
    %vm1100 = vcmp.eq.f32.partialorder %v1099, 8.507059e+37
    %v1101 = vand.u32 %v1032, 2147483648
    %v1102 = vor.u32 1.1754944e-38, %v1101
    %v1103 = vsel %vm1100, %v1102, %v1098
    %v1104 = vmul.f32 1.0, %v1103
    %v1105 = vrcp.pop %v1033
    %v1106 = vmul.f32 %v1033, %v1105
    %v1107 = vsub.f32 1.0, %v1106
    %v1108 = vmul.f32 %v1105, %v1107
    %v1109 = vadd.f32 %v1105, %v1108
    %vm1110 = vweird.f32 %v1033
    %vm1111 = vweird.f32 %v1105
    %vm1112 = vmor %vm1110, %vm1111
    %v1113 = vsel %vm1112, %v1105, %v1109
    %v1114 = vand.u32 2147483647, %v1033
    %vm1115 = vcmp.eq.f32.partialorder %v1114, 8.507059e+37
    %v1116 = vand.u32 %v1033, 2147483648
    %v1117 = vor.u32 1.1754944e-38, %v1116
    %v1118 = vsel %vm1115, %v1117, %v1113
    %v1119 = vmul.f32 1.0, %v1118
    %v1120 = vrcp.pop %v1034
    %v1121 = vmul.f32 %v1034, %v1120
    %v1122 = vsub.f32 1.0, %v1121
    %v1123 = vmul.f32 %v1120, %v1122
    %v1124 = vadd.f32 %v1120, %v1123
    %vm1125 = vweird.f32 %v1034
    %vm1126 = vweird.f32 %v1120
    %vm1127 = vmor %vm1125, %vm1126
    %v1128 = vsel %vm1127, %v1120, %v1124
    %v1129 = vand.u32 2147483647, %v1034
    %vm1130 = vcmp.eq.f32.partialorder %v1129, 8.507059e+37
    %v1131 = vand.u32 %v1034, 2147483648
    %v1132 = vor.u32 1.1754944e-38, %v1131
    %v1133 = vsel %vm1130, %v1132, %v1128
    %v1134 = vmul.f32 1.0, %v1133
    %v1135 = vrcp.pop %v1035
    %v1136 = vmul.f32 %v1035, %v1135
    %v1137 = vsub.f32 1.0, %v1136
    %v1138 = vmul.f32 %v1135, %v1137
    %v1139 = vadd.f32 %v1135, %v1138
    %vm1140 = vweird.f32 %v1035
    %vm1141 = vweird.f32 %v1135
    %vm1142 = vmor %vm1140, %vm1141
    %v1143 = vsel %vm1142, %v1135, %v1139
    %v1144 = vand.u32 2147483647, %v1035
    %vm1145 = vcmp.eq.f32.partialorder %v1144, 8.507059e+37
    %v1146 = vand.u32 %v1035, 2147483648
    %v1147 = vor.u32 1.1754944e-38, %v1146
    %v1148 = vsel %vm1145, %v1147, %v1143
    %v1149 = vmul.f32 1.0, %v1148
    %v1150 = vrcp.pop %v1036
    %v1151 = vmul.f32 %v1036, %v1150
    %v1152 = vsub.f32 1.0, %v1151
    %v1153 = vmul.f32 %v1150, %v1152
    %v1154 = vadd.f32 %v1150, %v1153
    %vm1155 = vweird.f32 %v1036
    %vm1156 = vweird.f32 %v1150
    %vm1157 = vmor %vm1155, %vm1156
    %v1158 = vsel %vm1157, %v1150, %v1154
    %v1159 = vand.u32 2147483647, %v1036
    %vm1160 = vcmp.eq.f32.partialorder %v1159, 8.507059e+37
    %v1161 = vand.u32 %v1036, 2147483648
    %v1162 = vor.u32 1.1754944e-38, %v1161
    %v1163 = vsel %vm1160, %v1162, %v1158
    %v1164 = vmul.f32 1.0, %v1163
    %v1165 = vrcp.pop %v1037
    %v1166 = vmul.f32 %v1037, %v1165
    %v1167 = vsub.f32 1.0, %v1166
    %v1168 = vmul.f32 %v1165, %v1167
    %v1169 = vadd.f32 %v1165, %v1168
    %vm1170 = vweird.f32 %v1037
    %vm1171 = vweird.f32 %v1165
    %vm1172 = vmor %vm1170, %vm1171
    %v1173 = vsel %vm1172, %v1165, %v1169
    %v1174 = vand.u32 2147483647, %v1037
    %vm1175 = vcmp.eq.f32.partialorder %v1174, 8.507059e+37
    %v1176 = vand.u32 %v1037, 2147483648
    %v1177 = vor.u32 1.1754944e-38, %v1176
    %v1178 = vsel %vm1175, %v1177, %v1173
    %v1179 = vmul.f32 1.0, %v1178
    %v1180 = vrcp.pop %v1038
    %v1181 = vmul.f32 %v1038, %v1180
    %v1182 = vsub.f32 1.0, %v1181
    %v1183 = vmul.f32 %v1180, %v1182
    %v1184 = vadd.f32 %v1180, %v1183
    %vm1185 = vweird.f32 %v1038
    %vm1186 = vweird.f32 %v1180
    %vm1187 = vmor %vm1185, %vm1186
    %v1188 = vsel %vm1187, %v1180, %v1184
    %v1189 = vand.u32 2147483647, %v1038
    %vm1190 = vcmp.eq.f32.partialorder %v1189, 8.507059e+37
    %v1191 = vand.u32 %v1038, 2147483648
    %v1192 = vor.u32 1.1754944e-38, %v1191
    %v1193 = vsel %vm1190, %v1192, %v1188
    %v1194 = vmul.f32 1.0, %v1193
    %v1195 = vrcp.pop %v1039
    %v1196 = vmul.f32 %v1039, %v1195
    %v1197 = vsub.f32 1.0, %v1196
    %v1198 = vmul.f32 %v1195, %v1197
    %v1199 = vadd.f32 %v1195, %v1198
    %vm1200 = vweird.f32 %v1039
    %vm1201 = vweird.f32 %v1195
    %vm1202 = vmor %vm1200, %vm1201
    %v1203 = vsel %vm1202, %v1195, %v1199
    %v1204 = vand.u32 2147483647, %v1039
    %vm1205 = vcmp.eq.f32.partialorder %v1204, 8.507059e+37
    %v1206 = vand.u32 %v1039, 2147483648
    %v1207 = vor.u32 1.1754944e-38, %v1206
    %v1208 = vsel %vm1205, %v1207, %v1203
    %v1209 = vmul.f32 1.0, %v1208
    %v1210 = vrcp.pop %v1040
    %v1211 = vmul.f32 %v1040, %v1210
    %v1212 = vsub.f32 1.0, %v1211
    %v1213 = vmul.f32 %v1210, %v1212
    %v1214 = vadd.f32 %v1210, %v1213
    %vm1215 = vweird.f32 %v1040
    %vm1216 = vweird.f32 %v1210
    %vm1217 = vmor %vm1215, %vm1216
    %v1218 = vsel %vm1217, %v1210, %v1214
    %v1219 = vand.u32 2147483647, %v1040
    %vm1220 = vcmp.eq.f32.partialorder %v1219, 8.507059e+37
    %v1221 = vand.u32 %v1040, 2147483648
    %v1222 = vor.u32 1.1754944e-38, %v1221
    %v1223 = vsel %vm1220, %v1222, %v1218
    %v1224 = vmul.f32 1.0, %v1223
    %v1225 = vrcp.pop %v1041
    %v1226 = vmul.f32 %v1041, %v1225
    %v1227 = vsub.f32 1.0, %v1226
    %v1228 = vmul.f32 %v1225, %v1227
    %v1229 = vadd.f32 %v1225, %v1228
    %vm1230 = vweird.f32 %v1041
    %vm1231 = vweird.f32 %v1225
    %vm1232 = vmor %vm1230, %vm1231
    %v1233 = vsel %vm1232, %v1225, %v1229
    %v1234 = vand.u32 2147483647, %v1041
    %vm1235 = vcmp.eq.f32.partialorder %v1234, 8.507059e+37
    %v1236 = vand.u32 %v1041, 2147483648
    %v1237 = vor.u32 1.1754944e-38, %v1236
    %v1238 = vsel %vm1235, %v1237, %v1233
    %v1239 = vmul.f32 1.0, %v1238
    %v1240 = vrcp.pop %v1042
    %v1241 = vmul.f32 %v1042, %v1240
    %v1242 = vsub.f32 1.0, %v1241
    %v1243 = vmul.f32 %v1240, %v1242
    %v1244 = vadd.f32 %v1240, %v1243
    %vm1245 = vweird.f32 %v1042
    %vm1246 = vweird.f32 %v1240
    %vm1247 = vmor %vm1245, %vm1246
    %v1248 = vsel %vm1247, %v1240, %v1244
    %v1249 = vand.u32 2147483647, %v1042
    %vm1250 = vcmp.eq.f32.partialorder %v1249, 8.507059e+37
    %v1251 = vand.u32 %v1042, 2147483648
    %v1252 = vor.u32 1.1754944e-38, %v1251
    %v1253 = vsel %vm1250, %v1252, %v1248
    %v1254 = vmul.f32 1.0, %v1253
    %v1255 = vrcp.pop %v1043
    %v1256 = vmul.f32 %v1043, %v1255
    %v1257 = vsub.f32 1.0, %v1256
    %v1258 = vmul.f32 %v1255, %v1257
    %v1259 = vadd.f32 %v1255, %v1258
    %vm1260 = vweird.f32 %v1043
    %vm1261 = vweird.f32 %v1255
    %vm1262 = vmor %vm1260, %vm1261
    %v1263 = vsel %vm1262, %v1255, %v1259
    %v1264 = vand.u32 2147483647, %v1043
    %vm1265 = vcmp.eq.f32.partialorder %v1264, 8.507059e+37
    %v1266 = vand.u32 %v1043, 2147483648
    %v1267 = vor.u32 1.1754944e-38, %v1266
    %v1268 = vsel %vm1265, %v1267, %v1263
    %v1269 = vmul.f32 1.0, %v1268
    %v1270 = vrcp.pop %v1044
    %v1271 = vmul.f32 %v1044, %v1270
    %v1272 = vsub.f32 1.0, %v1271
    %v1273 = vmul.f32 %v1270, %v1272
    %v1274 = vadd.f32 %v1270, %v1273
    %vm1275 = vweird.f32 %v1044
    %vm1276 = vweird.f32 %v1270
    %vm1277 = vmor %vm1275, %vm1276
    %v1278 = vsel %vm1277, %v1270, %v1274
    %v1279 = vand.u32 2147483647, %v1044
    %vm1280 = vcmp.eq.f32.partialorder %v1279, 8.507059e+37
    %v1281 = vand.u32 %v1044, 2147483648
    %v1282 = vor.u32 1.1754944e-38, %v1281
    %v1283 = vsel %vm1280, %v1282, %v1278
    %v1284 = vmul.f32 1.0, %v1283
    %v1285 = vld [vmem:[#allocation7] sm:$0xff]
    %v1286 = vld [vmem:[#allocation7 + $0x8] sm:$0xff]
    %v1287 = vld [vmem:[#allocation7 + $0x10] sm:$0xff]
    %v1288 = vld [vmem:[#allocation7 + $0x18] sm:$0xff]
    %v1289 = vld [vmem:[#allocation7 + $0x20] sm:$0xff]
    %v1290 = vld [vmem:[#allocation7 + $0x28] sm:$0xff]
    %v1291 = vld [vmem:[#allocation7 + $0x30] sm:$0xff]
    %v1292 = vld [vmem:[#allocation7 + $0x38] sm:$0xff]
    %v1293 = vld [vmem:[#allocation7 + $0x40] sm:$0xff]
    %v1294 = vld [vmem:[#allocation7 + $0x48] sm:$0xff]
    %v1295 = vld [vmem:[#allocation7 + $0x50] sm:$0xff]
    %v1296 = vld [vmem:[#allocation7 + $0x58] sm:$0xff]
    %v1297 = vld [vmem:[#allocation7 + $0x60] sm:$0xff]
    %v1298 = vld [vmem:[#allocation7 + $0x68] sm:$0xff]
    %v1299 = vld [vmem:[#allocation7 + $0x70] sm:$0xff]
    %v1300 = vld [vmem:[#allocation7 + $0x78] sm:$0xff]
    %v1301 = vmul.f32 %v1059, %v1285
    %v1302 = vmul.f32 %v1074, %v1286
    %v1303 = vmul.f32 %v1089, %v1287
    %v1304 = vmul.f32 %v1104, %v1288
    %v1305 = vmul.f32 %v1119, %v1289
    %v1306 = vmul.f32 %v1134, %v1290
    %v1307 = vmul.f32 %v1149, %v1291
    %v1308 = vmul.f32 %v1164, %v1292
    %v1309 = vmul.f32 %v1179, %v1293
    %v1310 = vmul.f32 %v1194, %v1294
    %v1311 = vmul.f32 %v1209, %v1295
    %v1312 = vmul.f32 %v1224, %v1296
    %v1313 = vmul.f32 %v1239, %v1297
    %v1314 = vmul.f32 %v1254, %v1298
    %v1315 = vmul.f32 %v1269, %v1299
    %v1316 = vmul.f32 %v1284, %v1300
    %v1317 = vadd.f32 %v1301, %v1302
    %v1318 = vrot.slane %v1317, 4
    %v1319 = vadd.f32 %v1317, %v1318
    %v1320 = vrot.slane %v1319, 2
    %v1321 = vadd.f32 %v1319, %v1320
    %v1322 = vrot.slane %v1321, 1
    %v1323 = vadd.f32 %v1321, %v1322
    %v1324 = vadd.f32 %v1303, %v1304
    %v1325 = vrot.slane %v1324, 4
    %v1326 = vadd.f32 %v1324, %v1325
    %v1327 = vrot.slane %v1326, 2
    %v1328 = vadd.f32 %v1326, %v1327
    %v1329 = vrot.slane %v1328, 1
    %v1330 = vadd.f32 %v1328, %v1329
    %v1331 = vadd.f32 %v1305, %v1306
    %v1332 = vrot.slane %v1331, 4
    %v1333 = vadd.f32 %v1331, %v1332
    %v1334 = vrot.slane %v1333, 2
    %v1335 = vadd.f32 %v1333, %v1334
    %v1336 = vrot.slane %v1335, 1
    %v1337 = vadd.f32 %v1335, %v1336
    %v1338 = vadd.f32 %v1307, %v1308
    %v1339 = vrot.slane %v1338, 4
    %v1340 = vadd.f32 %v1338, %v1339
    %v1341 = vrot.slane %v1340, 2
    %v1342 = vadd.f32 %v1340, %v1341
    %v1343 = vrot.slane %v1342, 1
    %v1344 = vadd.f32 %v1342, %v1343
    %v1345 = vadd.f32 %v1309, %v1310
    %v1346 = vrot.slane %v1345, 4
    %v1347 = vadd.f32 %v1345, %v1346
    %v1348 = vrot.slane %v1347, 2
    %v1349 = vadd.f32 %v1347, %v1348
    %v1350 = vrot.slane %v1349, 1
    %v1351 = vadd.f32 %v1349, %v1350
    %v1352 = vadd.f32 %v1311, %v1312
    %v1353 = vrot.slane %v1352, 4
    %v1354 = vadd.f32 %v1352, %v1353
    %v1355 = vrot.slane %v1354, 2
    %v1356 = vadd.f32 %v1354, %v1355
    %v1357 = vrot.slane %v1356, 1
    %v1358 = vadd.f32 %v1356, %v1357
    %v1359 = vadd.f32 %v1313, %v1314
    %v1360 = vrot.slane %v1359, 4
    %v1361 = vadd.f32 %v1359, %v1360
    %v1362 = vrot.slane %v1361, 2
    %v1363 = vadd.f32 %v1361, %v1362
    %v1364 = vrot.slane %v1363, 1
    %v1365 = vadd.f32 %v1363, %v1364
    %v1366 = vadd.f32 %v1315, %v1316
    %v1367 = vrot.slane %v1366, 4
    %v1368 = vadd.f32 %v1366, %v1367
    %v1369 = vrot.slane %v1368, 2
    %v1370 = vadd.f32 %v1368, %v1369
    %v1371 = vrot.slane %v1370, 1
    %v1372 = vadd.f32 %v1370, %v1371
    %v1373 = vmul.f32 %v920, %v940
    %v1382 = vsel %vm388, %v1330, %v1323
    %v1383 = vsel %vm390, %v1337, %v1382
    %v1384 = vsel %vm392, %v1344, %v1383
    %v1385 = vsel %vm394, %v1351, %v1384
    %v1386 = vsel %vm396, %v1358, %v1385
    %v1387 = vsel %vm398, %v1365, %v1386
    %v1388 = vsel %vm400, %v1372, %v1387
    %v1390 = vadd.f32 %v1373, %v1388
    %1391 = vst [vmem:[#allocation11] sm:$0xff] %v1390
    %v1392 = vtanh.pop %v1390
    %v1393 = vmul.f32 %v939, %v1392
    %v1394 = vpack.c.bf16 %v1393, %v1393
    %v1396 = vrot.slane %v1394, 3
    %vm1397 = vcmask 1040384
    %v1400 = vsel %vm1397, %v1394, %v1396
    %v1401 = vsel %vm388, %v1394, %v1396
    %v1403 = vrot.slane %v1401, 1
    %v1404 = vsel %vm390, %v1394, %v1396
    %v1406 = vrot.slane %v1404, 2
    %v1407 = vsel %vm392, %v1394, %v1396
    %v1409 = vrot.slane %v1407, 3
    %1414 = vst [vmem:[#allocation12] sm:$0x1] %v1400
    %1415 = vst [vmem:[#allocation12 + $0x1] sm:$0x1] %v1403
    %1416 = vst [vmem:[#allocation12 + $0x2] sm:$0x1] %v1406
    %1417 = vst [vmem:[#allocation12 + $0x3] sm:$0x1] %v1409
    // Predicated region
    $region46: #{tpu_custom_call.1} parent=1 // pred_check
      _
    $region47: #{tpu_custom_call.1} parent=1 // pred_check_branch
      %1419 = sbr.rel (0) target = $region49
    $region48: #{tpu_custom_call.1} parent=1 // pred_region
      %1421 = vsyncadd [#allocation4], 112
      %s1422 = sshll.u32 [#allocation11], 4
      %s1423 = int_to_ptr.vmem [resolvable:$true] %s1422
      %s1424 = sshll.u32 %s6, 4
      %s1425 = int_to_ptr.hbm [resolvable:$true] %s1424
      %1430 = dma.vmem_to_hbm [thread:$0]  %s1423, 16, %s1425, [#allocation4], 16, 16, 1
    $region49: #{tpu_custom_call.1} parent=1 // pred_fallthru
      _
    // Predicated region
    $region50: #{tpu_custom_call.1} parent=1 // pred_check
      _
    $region51: #{tpu_custom_call.1} parent=1 // pred_check_branch
      %1432 = sbr.rel (0) target = $region53
    $region52: #{tpu_custom_call.1} parent=1 // pred_region
      %1434 = vsyncadd [#allocation13], 48
      %s1435 = sshll.u32 [#allocation12], 4
      %s1436 = int_to_ptr.vmem [resolvable:$true] %s1435
      %s1437 = sshll.u32 %s7, 4
      %s1438 = int_to_ptr.hbm [resolvable:$true] %s1437
      %1443 = dma.vmem_to_hbm [thread:$0]  %s1436, 16, %s1438, [#allocation13], 16, 16, 1
    $region53: #{tpu_custom_call.1} parent=1 // pred_fallthru
      _
    // Predicated region
    $region54: #{tpu_custom_call.1} parent=1 // pred_check
      _
    $region55: #{tpu_custom_call.1} parent=1 // pred_check_branch
      %1445 = sbr.rel (0) target = $region57
    $region56: #{tpu_custom_call.1} parent=1 // pred_region
      %1447 = dma.done [#allocation4], 128
    $region57: #{tpu_custom_call.1} parent=1 // pred_fallthru
      _
    // Predicated region
    $region58: #{tpu_custom_call.1} parent=1 // pred_check
      _
    $region59: #{tpu_custom_call.1} parent=1 // pred_check_branch
      %1449 = sbr.rel (0) target = $region61
    $region60: #{tpu_custom_call.1} parent=1 // pred_region
      %1451 = dma.done [#allocation13], 64
    $region61: #{tpu_custom_call.1} parent=1 // pred_fallthru
      _
    %1452 = vsyncpa [#allocation3], 1
    %1453 = vsyncpa [#allocation6], 1
    %1454 = vsyncpa [#allocation9], 1
    %1455 = vsyncpa [#allocation4], 1
    %1456 = vsyncpa [#allocation13], 1

</llo_original>
